<compile_context>
chip_gen: v5e
topology: v5e:2x2
jax: 0.10.0
libtpu: 0.0.40
codegen_flags: <defaults>
</compile_context>

<pallas_src>
import functools
import math

import jax
import jax.numpy as jnp
from jax import lax
from jax.experimental import pallas as pl
from jax.experimental.pallas import tpu as pltpu


CFG = dict(
    hidden=32,
    num_heads=2,
    num_layers=2,
    intermediate=64,
    vocab=50,
    max_pos=16,
    type_vocab=2,
    num_classes=5,
    ln_eps=1e-12,
)

# MXU matmul input dtype (f32 accumulation everywhere via preferred_element_type).
_MXU_DTYPE = jnp.bfloat16


# ----------------------------- in-kernel helpers -----------------------------

def _mm(a, b):
    """a @ b on the MXU with bf16 inputs, f32 accumulation."""
    return jnp.dot(a.astype(_MXU_DTYPE), b.astype(_MXU_DTYPE),
                   preferred_element_type=jnp.float32)


def _mm_nt(a, b):
    """a @ b.T without materializing a transpose (contract on last dims)."""
    return lax.dot_general(a.astype(_MXU_DTYPE), b.astype(_MXU_DTYPE),
                           (((1,), (1,)), ((), ())),
                           preferred_element_type=jnp.float32)


def _layernorm(h, g, b, eps):
    mu = jnp.mean(h, axis=-1, keepdims=True)
    var = jnp.mean(jnp.square(h - mu), axis=-1, keepdims=True)
    return (h - mu) * lax.rsqrt(var + jnp.float32(eps)) * g + b


def _gelu(y):
    # tanh-approx GELU (HF BERT default is erf-GELU).
    # TODO(synk): switch to exact erf-GELU if bit-exactness vs PyTorch is required.
    c = jnp.float32(0.7978845608028654)
    return 0.5 * y * (1.0 + jnp.tanh(c * (y + 0.044715 * y * y * y)))


# ----------------------------- fused encoder kernel -----------------------------

def _bert_kernel(emb_ref, bias_ref, eg_ref, ebeta_ref,
                 qkvw_ref, qkvb_ref, ow_ref, ob_ref, l1g_ref, l1b_ref,
                 iw_ref, ib_ref, fw_ref, fb_ref, l2g_ref, l2b_ref,
                 cw_ref, cb_ref, o_ref, *,
                 num_layers, num_heads, head_dim, hidden, ln_eps):
    # One grid step == one batch element; everything stays in vregs/VMEM.
    x = emb_ref[...].astype(jnp.float32)                 # [S, H]
    bias = bias_ref[0].astype(jnp.float32)               # [1, S] additive key mask
    scale = jnp.float32(1.0 / math.sqrt(head_dim))

    # Embedding LayerNorm (no dummy zeros residual).
    h = _layernorm(x, eg_ref[...].astype(jnp.float32),
                   ebeta_ref[...].astype(jnp.float32), ln_eps)

    for l in range(num_layers):
        x_res = h                                         # [S, H]

        # ---- self-attention block (fused QKV projection) ----
        qkv = _mm(x_res, qkvw_ref[l]) + qkvb_ref[l].astype(jnp.float32)   # [S, 3H]
        heads = []
        for hd in range(num_heads):
            q = qkv[:, hd * head_dim:(hd + 1) * head_dim]                       # [S, dh]
            k = qkv[:, hidden + hd * head_dim: hidden + (hd + 1) * head_dim]    # [S, dh]
            v = qkv[:, 2 * hidden + hd * head_dim: 2 * hidden + (hd + 1) * head_dim]
            s = _mm_nt(q, k) * scale + bias               # [S, S]
            s = s - jnp.max(s, axis=-1, keepdims=True)
            p = jnp.exp(s)
            p = p * pl.reciprocal(jnp.sum(p, axis=-1, keepdims=True), approx=True)
            heads.append(_mm(p, v))                       # [S, dh]
        ctx = jnp.concatenate(heads, axis=-1)             # [S, H]

        attn = _mm(ctx, ow_ref[l]) + ob_ref[l].astype(jnp.float32)
        h = _layernorm(attn + x_res,
                       l1g_ref[l].astype(jnp.float32),
                       l1b_ref[l].astype(jnp.float32), ln_eps)

        # ---- feed-forward block ----
        inter = _gelu(_mm(h, iw_ref[l]) + ib_ref[l].astype(jnp.float32))
        ffn = _mm(inter, fw_ref[l]) + fb_ref[l].astype(jnp.float32)
        h = _layernorm(ffn + h,
                       l2g_ref[l].astype(jnp.float32),
                       l2b_ref[l].astype(jnp.float32), ln_eps)

    # CLS token (last_hidden_state[:, 0, :]); nn.Dropout in eval mode is identity.
    # TODO(synk): training-mode dropout (prng mask) not implemented.
    cls = h[0:1, :]                                       # [1, H]
    logits = _mm(cls, cw_ref[...]) + cb_ref[...].astype(jnp.float32)   # [1, C]
    o_ref[0] = logits.astype(o_ref.dtype)


# ----------------------------- host-side wrapper -----------------------------

def init_params(cfg, seed=0):
    key = jax.random.PRNGKey(seed)

    def nxt():
        nonlocal key
        key, sub = jax.random.split(key)
        return sub

    def W(shape, std=0.02):
        return (std * jax.random.normal(nxt(), shape)).astype(jnp.float32)

    H, I = cfg["hidden"], cfg["intermediate"]
    p = {
        "word_emb": W((cfg["vocab"], H)),
        "pos_emb": W((cfg["max_pos"], H)),
        "type_emb": W((cfg["type_vocab"], H)),
        "emb_ln_g": jnp.ones((H,), jnp.float32),
        "emb_ln_b": jnp.zeros((H,), jnp.float32),
        "layers": [],
        "clf_w": W((H, cfg["num_classes"])),
        "clf_b": jnp.zeros((cfg["num_classes"],), jnp.float32),
    }
    for _ in range(cfg["num_layers"]):
        p["layers"].append({
            "q_w": W((H, H)), "q_b": jnp.zeros((H,), jnp.float32),
            "k_w": W((H, H)), "k_b": jnp.zeros((H,), jnp.float32),
            "v_w": W((H, H)), "v_b": jnp.zeros((H,), jnp.float32),
            "o_w": W((H, H)), "o_b": jnp.zeros((H,), jnp.float32),
            "ln1_g": jnp.ones((H,), jnp.float32), "ln1_b": jnp.zeros((H,), jnp.float32),
            "i_w": W((H, I)), "i_b": jnp.zeros((I,), jnp.float32),
            "f_w": W((I, H)), "f_b": jnp.zeros((H,), jnp.float32),
            "ln2_g": jnp.ones((H,), jnp.float32), "ln2_b": jnp.zeros((H,), jnp.float32),
        })
    return p


def pack_params(p, cfg):
    """Fuse QKV weights, stack per-layer params along a leading axis, pre-cast MXU weights."""
    H = cfg["hidden"]
    mxu = _MXU_DTYPE

    def stack(fn):
        return jnp.stack([fn(lyr) for lyr in p["layers"]], axis=0)

    return {
        "word_emb": p["word_emb"], "pos_emb": p["pos_emb"], "type_emb": p["type_emb"],
        "emb_ln_g": p["emb_ln_g"].reshape(1, H),
        "emb_ln_b": p["emb_ln_b"].reshape(1, H),
        "qkv_w": stack(lambda l: jnp.concatenate([l["q_w"], l["k_w"], l["v_w"]], axis=1)).astype(mxu),
        "qkv_b": stack(lambda l: jnp.concatenate([l["q_b"], l["k_b"], l["v_b"]])[None, :]),
        "o_w": stack(lambda l: l["o_w"]).astype(mxu),
        "o_b": stack(lambda l: l["o_b"][None, :]),
        "ln1_g": stack(lambda l: l["ln1_g"][None, :]),
        "ln1_b": stack(lambda l: l["ln1_b"][None, :]),
        "i_w": stack(lambda l: l["i_w"]).astype(mxu),
        "i_b": stack(lambda l: l["i_b"][None, :]),
        "f_w": stack(lambda l: l["f_w"]).astype(mxu),
        "f_b": stack(lambda l: l["f_b"][None, :]),
        "ln2_g": stack(lambda l: l["ln2_g"][None, :]),
        "ln2_b": stack(lambda l: l["ln2_b"][None, :]),
        "clf_w": p["clf_w"].astype(mxu),
        "clf_b": p["clf_b"].reshape(1, -1),
    }


def bert_flat_classifier(packed, input_ids, attention_mask, token_type_ids, cfg=CFG):
    B, S = input_ids.shape
    H = cfg["hidden"]
    nH = cfg["num_heads"]
    dh = H // nH
    L = cfg["num_layers"]
    I = cfg["intermediate"]
    C = cfg["num_classes"]

    # Embedding gathers stay in JAX (glue); everything downstream is one fused kernel.
    emb = (packed["word_emb"][input_ids]
           + packed["pos_emb"][:S][None, :, :]
           + packed["type_emb"][token_type_ids])
    emb2d = emb.reshape(B * S, H).astype(jnp.float32)

    # Additive attention-mask bias, computed once for all layers: [B, 1, S].
    mask_bias = ((1.0 - attention_mask.astype(jnp.float32)) * jnp.float32(-1e9))[:, None, :]

    def full(shape):
        return pl.BlockSpec(shape, lambda b: (0,) * len(shape))

    kernel = functools.partial(
        _bert_kernel, num_layers=L, num_heads=nH, head_dim=dh, hidden=H,
        ln_eps=cfg["ln_eps"])

    logits3 = pl.pallas_call(
        kernel,
        out_shape=jax.ShapeDtypeStruct((B, 1, C), jnp.float32),
        grid_spec=pl.GridSpec(
            grid=(B,),
            in_specs=[
                pl.BlockSpec((S, H), lambda b: (b, 0)),        # this batch's activation rows
                pl.BlockSpec((1, 1, S), lambda b: (b, 0, 0)),  # this batch's mask bias
                full((1, H)), full((1, H)),                    # embedding LayerNorm
                full((L, H, 3 * H)), full((L, 1, 3 * H)),      # fused QKV projection
                full((L, H, H)), full((L, 1, H)),              # attention output projection
                full((L, 1, H)), full((L, 1, H)),              # LN1
                full((L, H, I)), full((L, 1, I)),              # FFN intermediate
                full((L, I, H)), full((L, 1, H)),              # FFN output
                full((L, 1, H)), full((L, 1, H)),              # LN2
                full((H, C)), full((1, C)),                    # classifier head
            ],
            out_specs=pl.BlockSpec((1, 1, C), lambda b: (b, 0, 0)),
        ),
        compiler_params=pltpu.CompilerParams(
            dimension_semantics=("parallel",)),                # 2-TC sharding on v7x
    )(
        emb2d, mask_bias,
        packed["emb_ln_g"], packed["emb_ln_b"],
        packed["qkv_w"], packed["qkv_b"],
        packed["o_w"], packed["o_b"],
        packed["ln1_g"], packed["ln1_b"],
        packed["i_w"], packed["i_b"],
        packed["f_w"], packed["f_b"],
        packed["ln2_g"], packed["ln2_b"],
        packed["clf_w"], packed["clf_b"],
    )
    return logits3.reshape(B, C)


# ----------------------------- demo -----------------------------

if __name__ == "__main__":
    cfg = CFG
    B, S = 2, 8
    key = jax.random.PRNGKey(0)
    k_ids, _ = jax.random.split(key)

    input_ids = jax.random.randint(k_ids, (B, S), 0, cfg["vocab"], dtype=jnp.int32)
    token_type_ids = jnp.zeros((B, S), dtype=jnp.int32)
    attention_mask = jnp.ones((B, S), dtype=jnp.int32)
    # pad the tail of the second example to exercise masking
    attention_mask = attention_mask.at[1, 6:].set(0)

    params = init_params(cfg, seed=0)
    packed = pack_params(params, cfg)

    logits = bert_flat_classifier(packed, input_ids, attention_mask, token_type_ids, cfg)
    logits = jax.block_until_ready(logits)
    assert logits.shape == (B, cfg["num_classes"])
    assert bool(jnp.all(jnp.isfinite(logits)))
    print("KERNEL_OK")
</pallas_src>

<mosaic_0001>
module attributes {stable_mosaic.version = 11 : i64} {
  func.func @_bert_kernel(%arg0: i32, %arg1: memref<8x32xf32, #tpu.memory_space<vmem>>, %arg2: memref<1x1x8xf32, #tpu.memory_space<vmem>>, %arg3: memref<1x32xf32, #tpu.memory_space<vmem>>, %arg4: memref<1x32xf32, #tpu.memory_space<vmem>>, %arg5: memref<2x32x96xbf16, #tpu.memory_space<vmem>>, %arg6: memref<2x1x96xf32, #tpu.memory_space<vmem>>, %arg7: memref<2x32x32xbf16, #tpu.memory_space<vmem>>, %arg8: memref<2x1x32xf32, #tpu.memory_space<vmem>>, %arg9: memref<2x1x32xf32, #tpu.memory_space<vmem>>, %arg10: memref<2x1x32xf32, #tpu.memory_space<vmem>>, %arg11: memref<2x32x64xbf16, #tpu.memory_space<vmem>>, %arg12: memref<2x1x64xf32, #tpu.memory_space<vmem>>, %arg13: memref<2x64x32xbf16, #tpu.memory_space<vmem>>, %arg14: memref<2x1x32xf32, #tpu.memory_space<vmem>>, %arg15: memref<2x1x32xf32, #tpu.memory_space<vmem>>, %arg16: memref<2x1x32xf32, #tpu.memory_space<vmem>>, %arg17: memref<32x5xbf16, #tpu.memory_space<vmem>>, %arg18: memref<1x5xf32, #tpu.memory_space<vmem>>, %arg19: memref<1x1x5xf32, #tpu.memory_space<vmem>>) attributes {dimension_semantics = [#tpu.dimension_semantics<parallel>], iteration_bounds = array<i64: 2>, scalar_prefetch = 0 : i64, scratch_operands = 0 : i64, tpu.core_type = #tpu.core_type<tc>, window_params = [{transform_indices = @transform_0, window_bounds = array<i64: 8, 32>}, {transform_indices = @transform_1, window_bounds = array<i64: 1, 1, 8>}, {pipeline_mode = #tpu.pipeline_mode<synchronous>, transform_indices = @transform_2, window_bounds = array<i64: 1, 32>}, {pipeline_mode = #tpu.pipeline_mode<synchronous>, transform_indices = @transform_3, window_bounds = array<i64: 1, 32>}, {pipeline_mode = #tpu.pipeline_mode<synchronous>, transform_indices = @transform_4, window_bounds = array<i64: 2, 32, 96>}, {pipeline_mode = #tpu.pipeline_mode<synchronous>, transform_indices = @transform_5, window_bounds = array<i64: 2, 1, 96>}, {pipeline_mode = #tpu.pipeline_mode<synchronous>, transform_indices = @transform_6, window_bounds = array<i64: 2, 32, 32>}, {pipeline_mode = #tpu.pipeline_mode<synchronous>, transform_indices = @transform_7, window_bounds = array<i64: 2, 1, 32>}, {pipeline_mode = #tpu.pipeline_mode<synchronous>, transform_indices = @transform_8, window_bounds = array<i64: 2, 1, 32>}, {pipeline_mode = #tpu.pipeline_mode<synchronous>, transform_indices = @transform_9, window_bounds = array<i64: 2, 1, 32>}, {pipeline_mode = #tpu.pipeline_mode<synchronous>, transform_indices = @transform_10, window_bounds = array<i64: 2, 32, 64>}, {pipeline_mode = #tpu.pipeline_mode<synchronous>, transform_indices = @transform_11, window_bounds = array<i64: 2, 1, 64>}, {pipeline_mode = #tpu.pipeline_mode<synchronous>, transform_indices = @transform_12, window_bounds = array<i64: 2, 64, 32>}, {pipeline_mode = #tpu.pipeline_mode<synchronous>, transform_indices = @transform_13, window_bounds = array<i64: 2, 1, 32>}, {pipeline_mode = #tpu.pipeline_mode<synchronous>, transform_indices = @transform_14, window_bounds = array<i64: 2, 1, 32>}, {pipeline_mode = #tpu.pipeline_mode<synchronous>, transform_indices = @transform_15, window_bounds = array<i64: 2, 1, 32>}, {pipeline_mode = #tpu.pipeline_mode<synchronous>, transform_indices = @transform_16, window_bounds = array<i64: 32, 5>}, {pipeline_mode = #tpu.pipeline_mode<synchronous>, transform_indices = @transform_17, window_bounds = array<i64: 1, 5>}, {transform_indices = @transform_18, window_bounds = array<i64: 1, 1, 5>}]} {
    %c0 = arith.constant 0 : index
    %c0_0 = arith.constant 0 : index
    %0 = vector.load %arg1[%c0, %c0_0] : memref<8x32xf32, #tpu.memory_space<vmem>>, vector<8x32xf32>
    %c0_1 = arith.constant 0 : index
    %c0_2 = arith.constant 0 : index
    %c0_3 = arith.constant 0 : index
    %1 = vector.load %arg2[%c0_1, %c0_2, %c0_3] : memref<1x1x8xf32, #tpu.memory_space<vmem>>, vector<1x1x8xf32>
    %2 = vector.shape_cast %1 : vector<1x1x8xf32> to vector<1x8xf32>
    %c0_4 = arith.constant 0 : index
    %c0_5 = arith.constant 0 : index
    %3 = vector.load %arg3[%c0_4, %c0_5] : memref<1x32xf32, #tpu.memory_space<vmem>>, vector<1x32xf32>
    %c0_6 = arith.constant 0 : index
    %c0_7 = arith.constant 0 : index
    %4 = vector.load %arg4[%c0_6, %c0_7] : memref<1x32xf32, #tpu.memory_space<vmem>>, vector<1x32xf32>
    %cst = arith.constant dense<0.000000e+00> : vector<8xf32>
    %5 = vector.multi_reduction <add>, %0, %cst [1] : vector<8x32xf32> to vector<8xf32>
    %6 = vector.shape_cast %5 : vector<8xf32> to vector<8x1xf32>
    %cst_8 = arith.constant 3.200000e+01 : f32
    %7 = vector.broadcast %cst_8 : f32 to vector<8x1xf32>
    %8 = arith.divf %6, %7 : vector<8x1xf32>
    %9 = vector.broadcast %8 : vector<8x1xf32> to vector<8x32xf32>
    %10 = arith.subf %0, %9 : vector<8x32xf32>
    %11 = arith.mulf %10, %10 : vector<8x32xf32>
    %cst_9 = arith.constant dense<0.000000e+00> : vector<8xf32>
    %12 = vector.multi_reduction <add>, %11, %cst_9 [1] : vector<8x32xf32> to vector<8xf32>
    %13 = vector.shape_cast %12 : vector<8xf32> to vector<8x1xf32>
    %cst_10 = arith.constant 3.200000e+01 : f32
    %14 = vector.broadcast %cst_10 : f32 to vector<8x1xf32>
    %15 = arith.divf %13, %14 : vector<8x1xf32>
    %16 = vector.broadcast %8 : vector<8x1xf32> to vector<8x32xf32>
    %17 = arith.subf %0, %16 : vector<8x32xf32>
    %cst_11 = arith.constant 9.99999996E-13 : f32
    %18 = vector.broadcast %cst_11 : f32 to vector<8x1xf32>
    %19 = arith.addf %15, %18 : vector<8x1xf32>
    %20 = math.rsqrt %19 : vector<8x1xf32>
    %21 = vector.broadcast %20 : vector<8x1xf32> to vector<8x32xf32>
    %22 = arith.mulf %17, %21 : vector<8x32xf32>
    %23 = vector.broadcast %3 : vector<1x32xf32> to vector<8x32xf32>
    %24 = arith.mulf %22, %23 : vector<8x32xf32>
    %25 = vector.broadcast %4 : vector<1x32xf32> to vector<8x32xf32>
    %26 = arith.addf %24, %25 : vector<8x32xf32>
    %c0_12 = arith.constant 0 : index
    %c0_13 = arith.constant 0 : index
    %c0_14 = arith.constant 0 : index
    %27 = vector.load %arg5[%c0_12, %c0_13, %c0_14] : memref<2x32x96xbf16, #tpu.memory_space<vmem>>, vector<1x32x96xbf16>
    %28 = vector.shape_cast %27 : vector<1x32x96xbf16> to vector<32x96xbf16>
    %29 = arith.truncf %26 : vector<8x32xf32> to vector<8x32xbf16>
    %cst_15 = arith.constant dense<0.000000e+00> : vector<8x96xf32>
    %30 = tpu.matmul %29, %28, %cst_15 {dimension_numbers = #tpu.dot_dimension_numbers<[1], [0], [0], [1], [0, 0, 1, 1], [], []>} : vector<8x32xbf16>, vector<32x96xbf16>, vector<8x96xf32> -> vector<8x96xf32>
    %c0_16 = arith.constant 0 : index
    %c0_17 = arith.constant 0 : index
    %c0_18 = arith.constant 0 : index
    %31 = vector.load %arg6[%c0_16, %c0_17, %c0_18] : memref<2x1x96xf32, #tpu.memory_space<vmem>>, vector<1x1x96xf32>
    %32 = vector.shape_cast %31 : vector<1x1x96xf32> to vector<1x96xf32>
    %33 = vector.broadcast %32 : vector<1x96xf32> to vector<8x96xf32>
    %34 = arith.addf %30, %33 : vector<8x96xf32>
    %35 = vector.extract_strided_slice %34 {offsets = [0, 0], sizes = [8, 16], strides = [1, 1]} : vector<8x96xf32> to vector<8x16xf32>
    %36 = vector.extract_strided_slice %34 {offsets = [0, 32], sizes = [8, 16], strides = [1, 1]} : vector<8x96xf32> to vector<8x16xf32>
    %37 = vector.extract_strided_slice %34 {offsets = [0, 64], sizes = [8, 16], strides = [1, 1]} : vector<8x96xf32> to vector<8x16xf32>
    %38 = arith.truncf %35 : vector<8x16xf32> to vector<8x16xbf16>
    %39 = arith.truncf %36 : vector<8x16xf32> to vector<8x16xbf16>
    %cst_19 = arith.constant dense<0.000000e+00> : vector<8x8xf32>
    %40 = tpu.matmul %38, %39, %cst_19 {dimension_numbers = #tpu.dot_dimension_numbers<[1], [1], [0], [0], [0, 0, 1, 0], [], []>} : vector<8x16xbf16>, vector<8x16xbf16>, vector<8x8xf32> -> vector<8x8xf32>
    %cst_20 = arith.constant 2.500000e-01 : f32
    %41 = vector.broadcast %cst_20 : f32 to vector<8x8xf32>
    %42 = arith.mulf %40, %41 : vector<8x8xf32>
    %43 = vector.broadcast %2 : vector<1x8xf32> to vector<8x8xf32>
    %44 = arith.addf %42, %43 : vector<8x8xf32>
    %cst_21 = arith.constant dense<0xFF800000> : vector<8xf32>
    %45 = vector.multi_reduction <maximumf>, %44, %cst_21 [1] : vector<8x8xf32> to vector<8xf32>
    %46 = vector.shape_cast %45 : vector<8xf32> to vector<8x1xf32>
    %47 = vector.broadcast %46 : vector<8x1xf32> to vector<8x8xf32>
    %48 = arith.subf %44, %47 : vector<8x8xf32>
    %49 = math.exp %48 : vector<8x8xf32>
    %cst_22 = arith.constant dense<0.000000e+00> : vector<8xf32>
    %50 = vector.multi_reduction <add>, %49, %cst_22 [1] : vector<8x8xf32> to vector<8xf32>
    %51 = vector.shape_cast %50 : vector<8xf32> to vector<8x1xf32>
    %52 = tpu.reciprocal %51 {approx = true} : vector<8x1xf32> -> vector<8x1xf32>
    %53 = vector.broadcast %52 : vector<8x1xf32> to vector<8x8xf32>
    %54 = arith.mulf %49, %53 : vector<8x8xf32>
    %55 = arith.truncf %54 : vector<8x8xf32> to vector<8x8xbf16>
    %56 = arith.truncf %37 : vector<8x16xf32> to vector<8x16xbf16>
    %cst_23 = arith.constant dense<0.000000e+00> : vector<8x16xf32>
    %57 = tpu.matmul %55, %56, %cst_23 {dimension_numbers = #tpu.dot_dimension_numbers<[1], [0], [0], [1], [0, 0, 1, 1], [], []>} : vector<8x8xbf16>, vector<8x16xbf16>, vector<8x16xf32> -> vector<8x16xf32>
    %58 = vector.extract_strided_slice %34 {offsets = [0, 16], sizes = [8, 16], strides = [1, 1]} : vector<8x96xf32> to vector<8x16xf32>
    %59 = vector.extract_strided_slice %34 {offsets = [0, 48], sizes = [8, 16], strides = [1, 1]} : vector<8x96xf32> to vector<8x16xf32>
    %60 = vector.extract_strided_slice %34 {offsets = [0, 80], sizes = [8, 16], strides = [1, 1]} : vector<8x96xf32> to vector<8x16xf32>
    %61 = arith.truncf %58 : vector<8x16xf32> to vector<8x16xbf16>
    %62 = arith.truncf %59 : vector<8x16xf32> to vector<8x16xbf16>
    %cst_24 = arith.constant dense<0.000000e+00> : vector<8x8xf32>
    %63 = tpu.matmul %61, %62, %cst_24 {dimension_numbers = #tpu.dot_dimension_numbers<[1], [1], [0], [0], [0, 0, 1, 0], [], []>} : vector<8x16xbf16>, vector<8x16xbf16>, vector<8x8xf32> -> vector<8x8xf32>
    %cst_25 = arith.constant 2.500000e-01 : f32
    %64 = vector.broadcast %cst_25 : f32 to vector<8x8xf32>
    %65 = arith.mulf %63, %64 : vector<8x8xf32>
    %66 = vector.broadcast %2 : vector<1x8xf32> to vector<8x8xf32>
    %67 = arith.addf %65, %66 : vector<8x8xf32>
    %cst_26 = arith.constant dense<0xFF800000> : vector<8xf32>
    %68 = vector.multi_reduction <maximumf>, %67, %cst_26 [1] : vector<8x8xf32> to vector<8xf32>
    %69 = vector.shape_cast %68 : vector<8xf32> to vector<8x1xf32>
    %70 = vector.broadcast %69 : vector<8x1xf32> to vector<8x8xf32>
    %71 = arith.subf %67, %70 : vector<8x8xf32>
    %72 = math.exp %71 : vector<8x8xf32>
    %cst_27 = arith.constant dense<0.000000e+00> : vector<8xf32>
    %73 = vector.multi_reduction <add>, %72, %cst_27 [1] : vector<8x8xf32> to vector<8xf32>
    %74 = vector.shape_cast %73 : vector<8xf32> to vector<8x1xf32>
    %75 = tpu.reciprocal %74 {approx = true} : vector<8x1xf32> -> vector<8x1xf32>
    %76 = vector.broadcast %75 : vector<8x1xf32> to vector<8x8xf32>
    %77 = arith.mulf %72, %76 : vector<8x8xf32>
    %78 = arith.truncf %77 : vector<8x8xf32> to vector<8x8xbf16>
    %79 = arith.truncf %60 : vector<8x16xf32> to vector<8x16xbf16>
    %cst_28 = arith.constant dense<0.000000e+00> : vector<8x16xf32>
    %80 = tpu.matmul %78, %79, %cst_28 {dimension_numbers = #tpu.dot_dimension_numbers<[1], [0], [0], [1], [0, 0, 1, 1], [], []>} : vector<8x8xbf16>, vector<8x16xbf16>, vector<8x16xf32> -> vector<8x16xf32>
    %81 = tpu.concatenate %57, %80 in 1 : vector<8x16xf32>, vector<8x16xf32> -> vector<8x32xf32>
    %c0_29 = arith.constant 0 : index
    %c0_30 = arith.constant 0 : index
    %c0_31 = arith.constant 0 : index
    %82 = vector.load %arg7[%c0_29, %c0_30, %c0_31] : memref<2x32x32xbf16, #tpu.memory_space<vmem>>, vector<1x32x32xbf16>
    %83 = vector.shape_cast %82 : vector<1x32x32xbf16> to vector<32x32xbf16>
    %84 = arith.truncf %81 : vector<8x32xf32> to vector<8x32xbf16>
    %cst_32 = arith.constant dense<0.000000e+00> : vector<8x32xf32>
    %85 = tpu.matmul %84, %83, %cst_32 {dimension_numbers = #tpu.dot_dimension_numbers<[1], [0], [0], [1], [0, 0, 1, 1], [], []>} : vector<8x32xbf16>, vector<32x32xbf16>, vector<8x32xf32> -> vector<8x32xf32>
    %c0_33 = arith.constant 0 : index
    %c0_34 = arith.constant 0 : index
    %c0_35 = arith.constant 0 : index
    %86 = vector.load %arg8[%c0_33, %c0_34, %c0_35] : memref<2x1x32xf32, #tpu.memory_space<vmem>>, vector<1x1x32xf32>
    %87 = vector.shape_cast %86 : vector<1x1x32xf32> to vector<1x32xf32>
    %88 = vector.broadcast %87 : vector<1x32xf32> to vector<8x32xf32>
    %89 = arith.addf %85, %88 : vector<8x32xf32>
    %90 = arith.addf %89, %26 : vector<8x32xf32>
    %c0_36 = arith.constant 0 : index
    %c0_37 = arith.constant 0 : index
    %c0_38 = arith.constant 0 : index
    %91 = vector.load %arg9[%c0_36, %c0_37, %c0_38] : memref<2x1x32xf32, #tpu.memory_space<vmem>>, vector<1x1x32xf32>
    %92 = vector.shape_cast %91 : vector<1x1x32xf32> to vector<1x32xf32>
    %c0_39 = arith.constant 0 : index
    %c0_40 = arith.constant 0 : index
    %c0_41 = arith.constant 0 : index
    %93 = vector.load %arg10[%c0_39, %c0_40, %c0_41] : memref<2x1x32xf32, #tpu.memory_space<vmem>>, vector<1x1x32xf32>
    %94 = vector.shape_cast %93 : vector<1x1x32xf32> to vector<1x32xf32>
    %cst_42 = arith.constant dense<0.000000e+00> : vector<8xf32>
    %95 = vector.multi_reduction <add>, %90, %cst_42 [1] : vector<8x32xf32> to vector<8xf32>
    %96 = vector.shape_cast %95 : vector<8xf32> to vector<8x1xf32>
    %cst_43 = arith.constant 3.200000e+01 : f32
    %97 = vector.broadcast %cst_43 : f32 to vector<8x1xf32>
    %98 = arith.divf %96, %97 : vector<8x1xf32>
    %99 = vector.broadcast %98 : vector<8x1xf32> to vector<8x32xf32>
    %100 = arith.subf %90, %99 : vector<8x32xf32>
    %101 = arith.mulf %100, %100 : vector<8x32xf32>
    %cst_44 = arith.constant dense<0.000000e+00> : vector<8xf32>
    %102 = vector.multi_reduction <add>, %101, %cst_44 [1] : vector<8x32xf32> to vector<8xf32>
    %103 = vector.shape_cast %102 : vector<8xf32> to vector<8x1xf32>
    %cst_45 = arith.constant 3.200000e+01 : f32
    %104 = vector.broadcast %cst_45 : f32 to vector<8x1xf32>
    %105 = arith.divf %103, %104 : vector<8x1xf32>
    %106 = vector.broadcast %98 : vector<8x1xf32> to vector<8x32xf32>
    %107 = arith.subf %90, %106 : vector<8x32xf32>
    %cst_46 = arith.constant 9.99999996E-13 : f32
    %108 = vector.broadcast %cst_46 : f32 to vector<8x1xf32>
    %109 = arith.addf %105, %108 : vector<8x1xf32>
    %110 = math.rsqrt %109 : vector<8x1xf32>
    %111 = vector.broadcast %110 : vector<8x1xf32> to vector<8x32xf32>
    %112 = arith.mulf %107, %111 : vector<8x32xf32>
    %113 = vector.broadcast %92 : vector<1x32xf32> to vector<8x32xf32>
    %114 = arith.mulf %112, %113 : vector<8x32xf32>
    %115 = vector.broadcast %94 : vector<1x32xf32> to vector<8x32xf32>
    %116 = arith.addf %114, %115 : vector<8x32xf32>
    %c0_47 = arith.constant 0 : index
    %c0_48 = arith.constant 0 : index
    %c0_49 = arith.constant 0 : index
    %117 = vector.load %arg11[%c0_47, %c0_48, %c0_49] : memref<2x32x64xbf16, #tpu.memory_space<vmem>>, vector<1x32x64xbf16>
    %118 = vector.shape_cast %117 : vector<1x32x64xbf16> to vector<32x64xbf16>
    %119 = arith.truncf %116 : vector<8x32xf32> to vector<8x32xbf16>
    %cst_50 = arith.constant dense<0.000000e+00> : vector<8x64xf32>
    %120 = tpu.matmul %119, %118, %cst_50 {dimension_numbers = #tpu.dot_dimension_numbers<[1], [0], [0], [1], [0, 0, 1, 1], [], []>} : vector<8x32xbf16>, vector<32x64xbf16>, vector<8x64xf32> -> vector<8x64xf32>
    %c0_51 = arith.constant 0 : index
    %c0_52 = arith.constant 0 : index
    %c0_53 = arith.constant 0 : index
    %121 = vector.load %arg12[%c0_51, %c0_52, %c0_53] : memref<2x1x64xf32, #tpu.memory_space<vmem>>, vector<1x1x64xf32>
    %122 = vector.shape_cast %121 : vector<1x1x64xf32> to vector<1x64xf32>
    %123 = vector.broadcast %122 : vector<1x64xf32> to vector<8x64xf32>
    %124 = arith.addf %120, %123 : vector<8x64xf32>
    %cst_54 = arith.constant 5.000000e-01 : f32
    %125 = vector.broadcast %cst_54 : f32 to vector<8x64xf32>
    %126 = arith.mulf %125, %124 : vector<8x64xf32>
    %cst_55 = arith.constant 4.471500e-02 : f32
    %127 = vector.broadcast %cst_55 : f32 to vector<8x64xf32>
    %128 = arith.mulf %127, %124 : vector<8x64xf32>
    %129 = arith.mulf %128, %124 : vector<8x64xf32>
    %130 = arith.mulf %129, %124 : vector<8x64xf32>
    %131 = arith.addf %124, %130 : vector<8x64xf32>
    %cst_56 = arith.constant 0.797884583 : f32
    %132 = vector.broadcast %cst_56 : f32 to vector<8x64xf32>
    %133 = arith.mulf %132, %131 : vector<8x64xf32>
    %134 = math.tanh %133 : vector<8x64xf32>
    %cst_57 = arith.constant 1.000000e+00 : f32
    %135 = vector.broadcast %cst_57 : f32 to vector<8x64xf32>
    %136 = arith.addf %135, %134 : vector<8x64xf32>
    %137 = arith.mulf %126, %136 : vector<8x64xf32>
    %c0_58 = arith.constant 0 : index
    %c0_59 = arith.constant 0 : index
    %c0_60 = arith.constant 0 : index
    %138 = vector.load %arg13[%c0_58, %c0_59, %c0_60] : memref<2x64x32xbf16, #tpu.memory_space<vmem>>, vector<1x64x32xbf16>
    %139 = vector.shape_cast %138 : vector<1x64x32xbf16> to vector<64x32xbf16>
    %140 = arith.truncf %137 : vector<8x64xf32> to vector<8x64xbf16>
    %cst_61 = arith.constant dense<0.000000e+00> : vector<8x32xf32>
    %141 = tpu.matmul %140, %139, %cst_61 {dimension_numbers = #tpu.dot_dimension_numbers<[1], [0], [0], [1], [0, 0, 1, 1], [], []>} : vector<8x64xbf16>, vector<64x32xbf16>, vector<8x32xf32> -> vector<8x32xf32>
    %c0_62 = arith.constant 0 : index
    %c0_63 = arith.constant 0 : index
    %c0_64 = arith.constant 0 : index
    %142 = vector.load %arg14[%c0_62, %c0_63, %c0_64] : memref<2x1x32xf32, #tpu.memory_space<vmem>>, vector<1x1x32xf32>
    %143 = vector.shape_cast %142 : vector<1x1x32xf32> to vector<1x32xf32>
    %144 = vector.broadcast %143 : vector<1x32xf32> to vector<8x32xf32>
    %145 = arith.addf %141, %144 : vector<8x32xf32>
    %146 = arith.addf %145, %116 : vector<8x32xf32>
    %c0_65 = arith.constant 0 : index
    %c0_66 = arith.constant 0 : index
    %c0_67 = arith.constant 0 : index
    %147 = vector.load %arg15[%c0_65, %c0_66, %c0_67] : memref<2x1x32xf32, #tpu.memory_space<vmem>>, vector<1x1x32xf32>
    %148 = vector.shape_cast %147 : vector<1x1x32xf32> to vector<1x32xf32>
    %c0_68 = arith.constant 0 : index
    %c0_69 = arith.constant 0 : index
    %c0_70 = arith.constant 0 : index
    %149 = vector.load %arg16[%c0_68, %c0_69, %c0_70] : memref<2x1x32xf32, #tpu.memory_space<vmem>>, vector<1x1x32xf32>
    %150 = vector.shape_cast %149 : vector<1x1x32xf32> to vector<1x32xf32>
    %cst_71 = arith.constant dense<0.000000e+00> : vector<8xf32>
    %151 = vector.multi_reduction <add>, %146, %cst_71 [1] : vector<8x32xf32> to vector<8xf32>
    %152 = vector.shape_cast %151 : vector<8xf32> to vector<8x1xf32>
    %cst_72 = arith.constant 3.200000e+01 : f32
    %153 = vector.broadcast %cst_72 : f32 to vector<8x1xf32>
    %154 = arith.divf %152, %153 : vector<8x1xf32>
    %155 = vector.broadcast %154 : vector<8x1xf32> to vector<8x32xf32>
    %156 = arith.subf %146, %155 : vector<8x32xf32>
    %157 = arith.mulf %156, %156 : vector<8x32xf32>
    %cst_73 = arith.constant dense<0.000000e+00> : vector<8xf32>
    %158 = vector.multi_reduction <add>, %157, %cst_73 [1] : vector<8x32xf32> to vector<8xf32>
    %159 = vector.shape_cast %158 : vector<8xf32> to vector<8x1xf32>
    %cst_74 = arith.constant 3.200000e+01 : f32
    %160 = vector.broadcast %cst_74 : f32 to vector<8x1xf32>
    %161 = arith.divf %159, %160 : vector<8x1xf32>
    %162 = vector.broadcast %154 : vector<8x1xf32> to vector<8x32xf32>
    %163 = arith.subf %146, %162 : vector<8x32xf32>
    %cst_75 = arith.constant 9.99999996E-13 : f32
    %164 = vector.broadcast %cst_75 : f32 to vector<8x1xf32>
    %165 = arith.addf %161, %164 : vector<8x1xf32>
    %166 = math.rsqrt %165 : vector<8x1xf32>
    %167 = vector.broadcast %166 : vector<8x1xf32> to vector<8x32xf32>
    %168 = arith.mulf %163, %167 : vector<8x32xf32>
    %169 = vector.broadcast %148 : vector<1x32xf32> to vector<8x32xf32>
    %170 = arith.mulf %168, %169 : vector<8x32xf32>
    %171 = vector.broadcast %150 : vector<1x32xf32> to vector<8x32xf32>
    %172 = arith.addf %170, %171 : vector<8x32xf32>
    %c1 = arith.constant 1 : index
    %c0_76 = arith.constant 0 : index
    %c0_77 = arith.constant 0 : index
    %173 = vector.load %arg5[%c1, %c0_76, %c0_77] : memref<2x32x96xbf16, #tpu.memory_space<vmem>>, vector<1x32x96xbf16>
    %174 = vector.shape_cast %173 : vector<1x32x96xbf16> to vector<32x96xbf16>
    %175 = arith.truncf %172 : vector<8x32xf32> to vector<8x32xbf16>
    %cst_78 = arith.constant dense<0.000000e+00> : vector<8x96xf32>
    %176 = tpu.matmul %175, %174, %cst_78 {dimension_numbers = #tpu.dot_dimension_numbers<[1], [0], [0], [1], [0, 0, 1, 1], [], []>} : vector<8x32xbf16>, vector<32x96xbf16>, vector<8x96xf32> -> vector<8x96xf32>
    %c1_79 = arith.constant 1 : index
    %c0_80 = arith.constant 0 : index
    %c0_81 = arith.constant 0 : index
    %177 = vector.load %arg6[%c1_79, %c0_80, %c0_81] : memref<2x1x96xf32, #tpu.memory_space<vmem>>, vector<1x1x96xf32>
    %178 = vector.shape_cast %177 : vector<1x1x96xf32> to vector<1x96xf32>
    %179 = vector.broadcast %178 : vector<1x96xf32> to vector<8x96xf32>
    %180 = arith.addf %176, %179 : vector<8x96xf32>
    %181 = vector.extract_strided_slice %180 {offsets = [0, 0], sizes = [8, 16], strides = [1, 1]} : vector<8x96xf32> to vector<8x16xf32>
    %182 = vector.extract_strided_slice %180 {offsets = [0, 32], sizes = [8, 16], strides = [1, 1]} : vector<8x96xf32> to vector<8x16xf32>
    %183 = vector.extract_strided_slice %180 {offsets = [0, 64], sizes = [8, 16], strides = [1, 1]} : vector<8x96xf32> to vector<8x16xf32>
    %184 = arith.truncf %181 : vector<8x16xf32> to vector<8x16xbf16>
    %185 = arith.truncf %182 : vector<8x16xf32> to vector<8x16xbf16>
    %cst_82 = arith.constant dense<0.000000e+00> : vector<8x8xf32>
    %186 = tpu.matmul %184, %185, %cst_82 {dimension_numbers = #tpu.dot_dimension_numbers<[1], [1], [0], [0], [0, 0, 1, 0], [], []>} : vector<8x16xbf16>, vector<8x16xbf16>, vector<8x8xf32> -> vector<8x8xf32>
    %cst_83 = arith.constant 2.500000e-01 : f32
    %187 = vector.broadcast %cst_83 : f32 to vector<8x8xf32>
    %188 = arith.mulf %186, %187 : vector<8x8xf32>
    %189 = vector.broadcast %2 : vector<1x8xf32> to vector<8x8xf32>
    %190 = arith.addf %188, %189 : vector<8x8xf32>
    %cst_84 = arith.constant dense<0xFF800000> : vector<8xf32>
    %191 = vector.multi_reduction <maximumf>, %190, %cst_84 [1] : vector<8x8xf32> to vector<8xf32>
    %192 = vector.shape_cast %191 : vector<8xf32> to vector<8x1xf32>
    %193 = vector.broadcast %192 : vector<8x1xf32> to vector<8x8xf32>
    %194 = arith.subf %190, %193 : vector<8x8xf32>
    %195 = math.exp %194 : vector<8x8xf32>
    %cst_85 = arith.constant dense<0.000000e+00> : vector<8xf32>
    %196 = vector.multi_reduction <add>, %195, %cst_85 [1] : vector<8x8xf32> to vector<8xf32>
    %197 = vector.shape_cast %196 : vector<8xf32> to vector<8x1xf32>
    %198 = tpu.reciprocal %197 {approx = true} : vector<8x1xf32> -> vector<8x1xf32>
    %199 = vector.broadcast %198 : vector<8x1xf32> to vector<8x8xf32>
    %200 = arith.mulf %195, %199 : vector<8x8xf32>
    %201 = arith.truncf %200 : vector<8x8xf32> to vector<8x8xbf16>
    %202 = arith.truncf %183 : vector<8x16xf32> to vector<8x16xbf16>
    %cst_86 = arith.constant dense<0.000000e+00> : vector<8x16xf32>
    %203 = tpu.matmul %201, %202, %cst_86 {dimension_numbers = #tpu.dot_dimension_numbers<[1], [0], [0], [1], [0, 0, 1, 1], [], []>} : vector<8x8xbf16>, vector<8x16xbf16>, vector<8x16xf32> -> vector<8x16xf32>
    %204 = vector.extract_strided_slice %180 {offsets = [0, 16], sizes = [8, 16], strides = [1, 1]} : vector<8x96xf32> to vector<8x16xf32>
    %205 = vector.extract_strided_slice %180 {offsets = [0, 48], sizes = [8, 16], strides = [1, 1]} : vector<8x96xf32> to vector<8x16xf32>
    %206 = vector.extract_strided_slice %180 {offsets = [0, 80], sizes = [8, 16], strides = [1, 1]} : vector<8x96xf32> to vector<8x16xf32>
    %207 = arith.truncf %204 : vector<8x16xf32> to vector<8x16xbf16>
    %208 = arith.truncf %205 : vector<8x16xf32> to vector<8x16xbf16>
    %cst_87 = arith.constant dense<0.000000e+00> : vector<8x8xf32>
    %209 = tpu.matmul %207, %208, %cst_87 {dimension_numbers = #tpu.dot_dimension_numbers<[1], [1], [0], [0], [0, 0, 1, 0], [], []>} : vector<8x16xbf16>, vector<8x16xbf16>, vector<8x8xf32> -> vector<8x8xf32>
    %cst_88 = arith.constant 2.500000e-01 : f32
    %210 = vector.broadcast %cst_88 : f32 to vector<8x8xf32>
    %211 = arith.mulf %209, %210 : vector<8x8xf32>
    %212 = vector.broadcast %2 : vector<1x8xf32> to vector<8x8xf32>
    %213 = arith.addf %211, %212 : vector<8x8xf32>
    %cst_89 = arith.constant dense<0xFF800000> : vector<8xf32>
    %214 = vector.multi_reduction <maximumf>, %213, %cst_89 [1] : vector<8x8xf32> to vector<8xf32>
    %215 = vector.shape_cast %214 : vector<8xf32> to vector<8x1xf32>
    %216 = vector.broadcast %215 : vector<8x1xf32> to vector<8x8xf32>
    %217 = arith.subf %213, %216 : vector<8x8xf32>
    %218 = math.exp %217 : vector<8x8xf32>
    %cst_90 = arith.constant dense<0.000000e+00> : vector<8xf32>
    %219 = vector.multi_reduction <add>, %218, %cst_90 [1] : vector<8x8xf32> to vector<8xf32>
    %220 = vector.shape_cast %219 : vector<8xf32> to vector<8x1xf32>
    %221 = tpu.reciprocal %220 {approx = true} : vector<8x1xf32> -> vector<8x1xf32>
    %222 = vector.broadcast %221 : vector<8x1xf32> to vector<8x8xf32>
    %223 = arith.mulf %218, %222 : vector<8x8xf32>
    %224 = arith.truncf %223 : vector<8x8xf32> to vector<8x8xbf16>
    %225 = arith.truncf %206 : vector<8x16xf32> to vector<8x16xbf16>
    %cst_91 = arith.constant dense<0.000000e+00> : vector<8x16xf32>
    %226 = tpu.matmul %224, %225, %cst_91 {dimension_numbers = #tpu.dot_dimension_numbers<[1], [0], [0], [1], [0, 0, 1, 1], [], []>} : vector<8x8xbf16>, vector<8x16xbf16>, vector<8x16xf32> -> vector<8x16xf32>
    %227 = tpu.concatenate %203, %226 in 1 : vector<8x16xf32>, vector<8x16xf32> -> vector<8x32xf32>
    %c1_92 = arith.constant 1 : index
    %c0_93 = arith.constant 0 : index
    %c0_94 = arith.constant 0 : index
    %228 = vector.load %arg7[%c1_92, %c0_93, %c0_94] : memref<2x32x32xbf16, #tpu.memory_space<vmem>>, vector<1x32x32xbf16>
    %229 = vector.shape_cast %228 : vector<1x32x32xbf16> to vector<32x32xbf16>
    %230 = arith.truncf %227 : vector<8x32xf32> to vector<8x32xbf16>
    %cst_95 = arith.constant dense<0.000000e+00> : vector<8x32xf32>
    %231 = tpu.matmul %230, %229, %cst_95 {dimension_numbers = #tpu.dot_dimension_numbers<[1], [0], [0], [1], [0, 0, 1, 1], [], []>} : vector<8x32xbf16>, vector<32x32xbf16>, vector<8x32xf32> -> vector<8x32xf32>
    %c1_96 = arith.constant 1 : index
    %c0_97 = arith.constant 0 : index
    %c0_98 = arith.constant 0 : index
    %232 = vector.load %arg8[%c1_96, %c0_97, %c0_98] : memref<2x1x32xf32, #tpu.memory_space<vmem>>, vector<1x1x32xf32>
    %233 = vector.shape_cast %232 : vector<1x1x32xf32> to vector<1x32xf32>
    %234 = vector.broadcast %233 : vector<1x32xf32> to vector<8x32xf32>
    %235 = arith.addf %231, %234 : vector<8x32xf32>
    %236 = arith.addf %235, %172 : vector<8x32xf32>
    %c1_99 = arith.constant 1 : index
    %c0_100 = arith.constant 0 : index
    %c0_101 = arith.constant 0 : index
    %237 = vector.load %arg9[%c1_99, %c0_100, %c0_101] : memref<2x1x32xf32, #tpu.memory_space<vmem>>, vector<1x1x32xf32>
    %238 = vector.shape_cast %237 : vector<1x1x32xf32> to vector<1x32xf32>
    %c1_102 = arith.constant 1 : index
    %c0_103 = arith.constant 0 : index
    %c0_104 = arith.constant 0 : index
    %239 = vector.load %arg10[%c1_102, %c0_103, %c0_104] : memref<2x1x32xf32, #tpu.memory_space<vmem>>, vector<1x1x32xf32>
    %240 = vector.shape_cast %239 : vector<1x1x32xf32> to vector<1x32xf32>
    %cst_105 = arith.constant dense<0.000000e+00> : vector<8xf32>
    %241 = vector.multi_reduction <add>, %236, %cst_105 [1] : vector<8x32xf32> to vector<8xf32>
    %242 = vector.shape_cast %241 : vector<8xf32> to vector<8x1xf32>
    %cst_106 = arith.constant 3.200000e+01 : f32
    %243 = vector.broadcast %cst_106 : f32 to vector<8x1xf32>
    %244 = arith.divf %242, %243 : vector<8x1xf32>
    %245 = vector.broadcast %244 : vector<8x1xf32> to vector<8x32xf32>
    %246 = arith.subf %236, %245 : vector<8x32xf32>
    %247 = arith.mulf %246, %246 : vector<8x32xf32>
    %cst_107 = arith.constant dense<0.000000e+00> : vector<8xf32>
    %248 = vector.multi_reduction <add>, %247, %cst_107 [1] : vector<8x32xf32> to vector<8xf32>
    %249 = vector.shape_cast %248 : vector<8xf32> to vector<8x1xf32>
    %cst_108 = arith.constant 3.200000e+01 : f32
    %250 = vector.broadcast %cst_108 : f32 to vector<8x1xf32>
    %251 = arith.divf %249, %250 : vector<8x1xf32>
    %252 = vector.broadcast %244 : vector<8x1xf32> to vector<8x32xf32>
    %253 = arith.subf %236, %252 : vector<8x32xf32>
    %cst_109 = arith.constant 9.99999996E-13 : f32
    %254 = vector.broadcast %cst_109 : f32 to vector<8x1xf32>
    %255 = arith.addf %251, %254 : vector<8x1xf32>
    %256 = math.rsqrt %255 : vector<8x1xf32>
    %257 = vector.broadcast %256 : vector<8x1xf32> to vector<8x32xf32>
    %258 = arith.mulf %253, %257 : vector<8x32xf32>
    %259 = vector.broadcast %238 : vector<1x32xf32> to vector<8x32xf32>
    %260 = arith.mulf %258, %259 : vector<8x32xf32>
    %261 = vector.broadcast %240 : vector<1x32xf32> to vector<8x32xf32>
    %262 = arith.addf %260, %261 : vector<8x32xf32>
    %c1_110 = arith.constant 1 : index
    %c0_111 = arith.constant 0 : index
    %c0_112 = arith.constant 0 : index
    %263 = vector.load %arg11[%c1_110, %c0_111, %c0_112] : memref<2x32x64xbf16, #tpu.memory_space<vmem>>, vector<1x32x64xbf16>
    %264 = vector.shape_cast %263 : vector<1x32x64xbf16> to vector<32x64xbf16>
    %265 = arith.truncf %262 : vector<8x32xf32> to vector<8x32xbf16>
    %cst_113 = arith.constant dense<0.000000e+00> : vector<8x64xf32>
    %266 = tpu.matmul %265, %264, %cst_113 {dimension_numbers = #tpu.dot_dimension_numbers<[1], [0], [0], [1], [0, 0, 1, 1], [], []>} : vector<8x32xbf16>, vector<32x64xbf16>, vector<8x64xf32> -> vector<8x64xf32>
    %c1_114 = arith.constant 1 : index
    %c0_115 = arith.constant 0 : index
    %c0_116 = arith.constant 0 : index
    %267 = vector.load %arg12[%c1_114, %c0_115, %c0_116] : memref<2x1x64xf32, #tpu.memory_space<vmem>>, vector<1x1x64xf32>
    %268 = vector.shape_cast %267 : vector<1x1x64xf32> to vector<1x64xf32>
    %269 = vector.broadcast %268 : vector<1x64xf32> to vector<8x64xf32>
    %270 = arith.addf %266, %269 : vector<8x64xf32>
    %cst_117 = arith.constant 5.000000e-01 : f32
    %271 = vector.broadcast %cst_117 : f32 to vector<8x64xf32>
    %272 = arith.mulf %271, %270 : vector<8x64xf32>
    %cst_118 = arith.constant 4.471500e-02 : f32
    %273 = vector.broadcast %cst_118 : f32 to vector<8x64xf32>
    %274 = arith.mulf %273, %270 : vector<8x64xf32>
    %275 = arith.mulf %274, %270 : vector<8x64xf32>
    %276 = arith.mulf %275, %270 : vector<8x64xf32>
    %277 = arith.addf %270, %276 : vector<8x64xf32>
    %cst_119 = arith.constant 0.797884583 : f32
    %278 = vector.broadcast %cst_119 : f32 to vector<8x64xf32>
    %279 = arith.mulf %278, %277 : vector<8x64xf32>
    %280 = math.tanh %279 : vector<8x64xf32>
    %cst_120 = arith.constant 1.000000e+00 : f32
    %281 = vector.broadcast %cst_120 : f32 to vector<8x64xf32>
    %282 = arith.addf %281, %280 : vector<8x64xf32>
    %283 = arith.mulf %272, %282 : vector<8x64xf32>
    %c1_121 = arith.constant 1 : index
    %c0_122 = arith.constant 0 : index
    %c0_123 = arith.constant 0 : index
    %284 = vector.load %arg13[%c1_121, %c0_122, %c0_123] : memref<2x64x32xbf16, #tpu.memory_space<vmem>>, vector<1x64x32xbf16>
    %285 = vector.shape_cast %284 : vector<1x64x32xbf16> to vector<64x32xbf16>
    %286 = arith.truncf %283 : vector<8x64xf32> to vector<8x64xbf16>
    %cst_124 = arith.constant dense<0.000000e+00> : vector<8x32xf32>
    %287 = tpu.matmul %286, %285, %cst_124 {dimension_numbers = #tpu.dot_dimension_numbers<[1], [0], [0], [1], [0, 0, 1, 1], [], []>} : vector<8x64xbf16>, vector<64x32xbf16>, vector<8x32xf32> -> vector<8x32xf32>
    %c1_125 = arith.constant 1 : index
    %c0_126 = arith.constant 0 : index
    %c0_127 = arith.constant 0 : index
    %288 = vector.load %arg14[%c1_125, %c0_126, %c0_127] : memref<2x1x32xf32, #tpu.memory_space<vmem>>, vector<1x1x32xf32>
    %289 = vector.shape_cast %288 : vector<1x1x32xf32> to vector<1x32xf32>
    %290 = vector.broadcast %289 : vector<1x32xf32> to vector<8x32xf32>
    %291 = arith.addf %287, %290 : vector<8x32xf32>
    %292 = arith.addf %291, %262 : vector<8x32xf32>
    %c1_128 = arith.constant 1 : index
    %c0_129 = arith.constant 0 : index
    %c0_130 = arith.constant 0 : index
    %293 = vector.load %arg15[%c1_128, %c0_129, %c0_130] : memref<2x1x32xf32, #tpu.memory_space<vmem>>, vector<1x1x32xf32>
    %294 = vector.shape_cast %293 : vector<1x1x32xf32> to vector<1x32xf32>
    %c1_131 = arith.constant 1 : index
    %c0_132 = arith.constant 0 : index
    %c0_133 = arith.constant 0 : index
    %295 = vector.load %arg16[%c1_131, %c0_132, %c0_133] : memref<2x1x32xf32, #tpu.memory_space<vmem>>, vector<1x1x32xf32>
    %296 = vector.shape_cast %295 : vector<1x1x32xf32> to vector<1x32xf32>
    %cst_134 = arith.constant dense<0.000000e+00> : vector<8xf32>
    %297 = vector.multi_reduction <add>, %292, %cst_134 [1] : vector<8x32xf32> to vector<8xf32>
    %298 = vector.shape_cast %297 : vector<8xf32> to vector<8x1xf32>
    %cst_135 = arith.constant 3.200000e+01 : f32
    %299 = vector.broadcast %cst_135 : f32 to vector<8x1xf32>
    %300 = arith.divf %298, %299 : vector<8x1xf32>
    %301 = vector.broadcast %300 : vector<8x1xf32> to vector<8x32xf32>
    %302 = arith.subf %292, %301 : vector<8x32xf32>
    %303 = arith.mulf %302, %302 : vector<8x32xf32>
    %cst_136 = arith.constant dense<0.000000e+00> : vector<8xf32>
    %304 = vector.multi_reduction <add>, %303, %cst_136 [1] : vector<8x32xf32> to vector<8xf32>
    %305 = vector.shape_cast %304 : vector<8xf32> to vector<8x1xf32>
    %cst_137 = arith.constant 3.200000e+01 : f32
    %306 = vector.broadcast %cst_137 : f32 to vector<8x1xf32>
    %307 = arith.divf %305, %306 : vector<8x1xf32>
    %308 = vector.broadcast %300 : vector<8x1xf32> to vector<8x32xf32>
    %309 = arith.subf %292, %308 : vector<8x32xf32>
    %cst_138 = arith.constant 9.99999996E-13 : f32
    %310 = vector.broadcast %cst_138 : f32 to vector<8x1xf32>
    %311 = arith.addf %307, %310 : vector<8x1xf32>
    %312 = math.rsqrt %311 : vector<8x1xf32>
    %313 = vector.broadcast %312 : vector<8x1xf32> to vector<8x32xf32>
    %314 = arith.mulf %309, %313 : vector<8x32xf32>
    %315 = vector.broadcast %294 : vector<1x32xf32> to vector<8x32xf32>
    %316 = arith.mulf %314, %315 : vector<8x32xf32>
    %317 = vector.broadcast %296 : vector<1x32xf32> to vector<8x32xf32>
    %318 = arith.addf %316, %317 : vector<8x32xf32>
    %319 = vector.extract_strided_slice %318 {offsets = [0, 0], sizes = [1, 32], strides = [1, 1]} : vector<8x32xf32> to vector<1x32xf32>
    %c0_139 = arith.constant 0 : index
    %c0_140 = arith.constant 0 : index
    %320 = vector.load %arg17[%c0_139, %c0_140] : memref<32x5xbf16, #tpu.memory_space<vmem>>, vector<32x5xbf16>
    %321 = arith.truncf %319 : vector<1x32xf32> to vector<1x32xbf16>
    %cst_141 = arith.constant dense<0.000000e+00> : vector<1x5xf32>
    %322 = tpu.matmul %321, %320, %cst_141 {dimension_numbers = #tpu.dot_dimension_numbers<[1], [0], [0], [1], [0, 0, 1, 1], [], []>} : vector<1x32xbf16>, vector<32x5xbf16>, vector<1x5xf32> -> vector<1x5xf32>
    %c0_142 = arith.constant 0 : index
    %c0_143 = arith.constant 0 : index
    %323 = vector.load %arg18[%c0_142, %c0_143] : memref<1x5xf32, #tpu.memory_space<vmem>>, vector<1x5xf32>
    %324 = arith.addf %322, %323 : vector<1x5xf32>
    %c0_144 = arith.constant 0 : index
    %c0_145 = arith.constant 0 : index
    %c0_146 = arith.constant 0 : index
    %325 = vector.load %arg19[%c0_144, %c0_145, %c0_146] : memref<1x1x5xf32, #tpu.memory_space<vmem>>, vector<1x1x5xf32>
    %326 = vector.shape_cast %325 : vector<1x1x5xf32> to vector<1x5xf32>
    %327 = vector.shape_cast %324 : vector<1x5xf32> to vector<1x1x5xf32>
    tpu.vector_store %arg19[%c0_144, %c0_145, %c0_146], %327 {strides = array<i32>} : memref<1x1x5xf32, #tpu.memory_space<vmem>>, vector<1x1x5xf32>,
    return
  }
  func.func @transform_0(%arg0: i32) -> (i32, i32) {
    %c0_i32 = arith.constant 0 : i32
    %c0_i32_0 = arith.constant 0 : i32
    return %arg0, %c0_i32 : i32, i32
  }
  func.func @transform_1(%arg0: i32) -> (i32, i32, i32) {
    %c0_i32 = arith.constant 0 : i32
    %c0_i32_0 = arith.constant 0 : i32
    %c0_i32_1 = arith.constant 0 : i32
    return %arg0, %c0_i32, %c0_i32_0 : i32, i32, i32
  }
  func.func @transform_2(%arg0: i32) -> (i32, i32) {
    %c0_i32 = arith.constant 0 : i32
    %c0_i32_0 = arith.constant 0 : i32
    %c0_i32_1 = arith.constant 0 : i32
    return %c0_i32, %c0_i32_0 : i32, i32
  }
  func.func @transform_3(%arg0: i32) -> (i32, i32) {
    %c0_i32 = arith.constant 0 : i32
    %c0_i32_0 = arith.constant 0 : i32
    %c0_i32_1 = arith.constant 0 : i32
    return %c0_i32, %c0_i32_0 : i32, i32
  }
  func.func @transform_4(%arg0: i32) -> (i32, i32, i32) {
    %c0_i32 = arith.constant 0 : i32
    %c0_i32_0 = arith.constant 0 : i32
    %c0_i32_1 = arith.constant 0 : i32
    %c0_i32_2 = arith.constant 0 : i32
    return %c0_i32, %c0_i32_0, %c0_i32_1 : i32, i32, i32
  }
  func.func @transform_5(%arg0: i32) -> (i32, i32, i32) {
    %c0_i32 = arith.constant 0 : i32
    %c0_i32_0 = arith.constant 0 : i32
    %c0_i32_1 = arith.constant 0 : i32
    %c0_i32_2 = arith.constant 0 : i32
    return %c0_i32, %c0_i32_0, %c0_i32_1 : i32, i32, i32
  }
  func.func @transform_6(%arg0: i32) -> (i32, i32, i32) {
    %c0_i32 = arith.constant 0 : i32
    %c0_i32_0 = arith.constant 0 : i32
    %c0_i32_1 = arith.constant 0 : i32
    %c0_i32_2 = arith.constant 0 : i32
    return %c0_i32, %c0_i32_0, %c0_i32_1 : i32, i32, i32
  }
  func.func @transform_7(%arg0: i32) -> (i32, i32, i32) {
    %c0_i32 = arith.constant 0 : i32
    %c0_i32_0 = arith.constant 0 : i32
    %c0_i32_1 = arith.constant 0 : i32
    %c0_i32_2 = arith.constant 0 : i32
    return %c0_i32, %c0_i32_0, %c0_i32_1 : i32, i32, i32
  }
  func.func @transform_8(%arg0: i32) -> (i32, i32, i32) {
    %c0_i32 = arith.constant 0 : i32
    %c0_i32_0 = arith.constant 0 : i32
    %c0_i32_1 = arith.constant 0 : i32
    %c0_i32_2 = arith.constant 0 : i32
    return %c0_i32, %c0_i32_0, %c0_i32_1 : i32, i32, i32
  }
  func.func @transform_9(%arg0: i32) -> (i32, i32, i32) {
    %c0_i32 = arith.constant 0 : i32
    %c0_i32_0 = arith.constant 0 : i32
    %c0_i32_1 = arith.constant 0 : i32
    %c0_i32_2 = arith.constant 0 : i32
    return %c0_i32, %c0_i32_0, %c0_i32_1 : i32, i32, i32
  }
  func.func @transform_10(%arg0: i32) -> (i32, i32, i32) {
    %c0_i32 = arith.constant 0 : i32
    %c0_i32_0 = arith.constant 0 : i32
    %c0_i32_1 = arith.constant 0 : i32
    %c0_i32_2 = arith.constant 0 : i32
    return %c0_i32, %c0_i32_0, %c0_i32_1 : i32, i32, i32
  }
  func.func @transform_11(%arg0: i32) -> (i32, i32, i32) {
    %c0_i32 = arith.constant 0 : i32
    %c0_i32_0 = arith.constant 0 : i32
    %c0_i32_1 = arith.constant 0 : i32
    %c0_i32_2 = arith.constant 0 : i32
    return %c0_i32, %c0_i32_0, %c0_i32_1 : i32, i32, i32
  }
  func.func @transform_12(%arg0: i32) -> (i32, i32, i32) {
    %c0_i32 = arith.constant 0 : i32
    %c0_i32_0 = arith.constant 0 : i32
    %c0_i32_1 = arith.constant 0 : i32
    %c0_i32_2 = arith.constant 0 : i32
    return %c0_i32, %c0_i32_0, %c0_i32_1 : i32, i32, i32
  }
  func.func @transform_13(%arg0: i32) -> (i32, i32, i32) {
    %c0_i32 = arith.constant 0 : i32
    %c0_i32_0 = arith.constant 0 : i32
    %c0_i32_1 = arith.constant 0 : i32
    %c0_i32_2 = arith.constant 0 : i32
    return %c0_i32, %c0_i32_0, %c0_i32_1 : i32, i32, i32
  }
  func.func @transform_14(%arg0: i32) -> (i32, i32, i32) {
    %c0_i32 = arith.constant 0 : i32
    %c0_i32_0 = arith.constant 0 : i32
    %c0_i32_1 = arith.constant 0 : i32
    %c0_i32_2 = arith.constant 0 : i32
    return %c0_i32, %c0_i32_0, %c0_i32_1 : i32, i32, i32
  }
  func.func @transform_15(%arg0: i32) -> (i32, i32, i32) {
    %c0_i32 = arith.constant 0 : i32
    %c0_i32_0 = arith.constant 0 : i32
    %c0_i32_1 = arith.constant 0 : i32
    %c0_i32_2 = arith.constant 0 : i32
    return %c0_i32, %c0_i32_0, %c0_i32_1 : i32, i32, i32
  }
  func.func @transform_16(%arg0: i32) -> (i32, i32) {
    %c0_i32 = arith.constant 0 : i32
    %c0_i32_0 = arith.constant 0 : i32
    %c0_i32_1 = arith.constant 0 : i32
    return %c0_i32, %c0_i32_0 : i32, i32
  }
  func.func @transform_17(%arg0: i32) -> (i32, i32) {
    %c0_i32 = arith.constant 0 : i32
    %c0_i32_0 = arith.constant 0 : i32
    %c0_i32_1 = arith.constant 0 : i32
    return %c0_i32, %c0_i32_0 : i32, i32
  }
  func.func @transform_18(%arg0: i32) -> (i32, i32, i32) {
    %c0_i32 = arith.constant 0 : i32
    %c0_i32_0 = arith.constant 0 : i32
    %c0_i32_1 = arith.constant 0 : i32
    return %arg0, %c0_i32, %c0_i32_0 : i32, i32, i32
  }
}

</mosaic_0001>

<llo_original>
// kernel: tpu_custom_call.1
$region0: #{tpu_custom_call.1}
  #allocation0 [shape = 'u32[]', space=smem, size = 0x4, offset = 0x4, fixed_abs, tag = 'smem constant byte address 0x4 - core index']
  #allocation1 [shape = 'u32[72,128]{1,0:T(1,128)}', space=vmem, size = 0x9000, scoped, tag = 'internal scratch']
  %s0 = inlined_call_operand.vmem [shape: f32[16,32], index: 0, kind: input, shape index: {}]
  %s1 = inlined_call_operand.vmem [shape: f32[2,1,8], index: 1, kind: input, shape index: {}]
  %s2 = inlined_call_operand.vmem [shape: f32[1,32], index: 2, kind: input, shape index: {}]
  %s3 = inlined_call_operand.hbm [shape: f32[1,32], index: 3, kind: input, shape index: {}]
  %s4 = inlined_call_operand.vmem [shape: bf16[2,32,96], index: 4, kind: input, shape index: {}]
  %s5 = inlined_call_operand.vmem [shape: f32[2,1,96], index: 5, kind: input, shape index: {}]
  %s6 = inlined_call_operand.vmem [shape: bf16[2,32,32], index: 6, kind: input, shape index: {}]
  %s7 = inlined_call_operand.vmem [shape: f32[2,1,32], index: 7, kind: input, shape index: {}]
  %s8 = inlined_call_operand.hbm [shape: f32[2,1,32], index: 8, kind: input, shape index: {}]
  %s9 = inlined_call_operand.hbm [shape: f32[2,1,32], index: 9, kind: input, shape index: {}]
  %s10 = inlined_call_operand.vmem [shape: bf16[2,32,64], index: 10, kind: input, shape index: {}]
  %s11 = inlined_call_operand.vmem [shape: f32[2,1,64], index: 11, kind: input, shape index: {}]
  %s12 = inlined_call_operand.vmem [shape: bf16[2,64,32], index: 12, kind: input, shape index: {}]
  %s13 = inlined_call_operand.vmem [shape: f32[2,1,32], index: 13, kind: input, shape index: {}]
  %s14 = inlined_call_operand.vmem [shape: f32[2,1,32], index: 14, kind: input, shape index: {}]
  %s15 = inlined_call_operand.hbm [shape: f32[2,1,32], index: 15, kind: input, shape index: {}]
  %s16 = inlined_call_operand.vmem [shape: bf16[32,5], index: 16, kind: input, shape index: {}]
  %s17 = inlined_call_operand.vmem [shape: f32[1,5], index: 17, kind: input, shape index: {}]
  %s18 = inlined_call_operand.hbm [shape: f32[2,1,5], index: 18, kind: output, shape index: {}]
  %s19 = sld [smem:[#allocation0]]
  $region121: #{tpu_custom_call.1} parent=0
    _
  %s21 = ssub.s32 1, %s19
  %s22 = scalar_select 0, %s21, %s19
  $region1: #{tpu_custom_call.1} parent=0
    #allocation2 [shape = 'u8[512]{0}', space=vmem, size = 0x400, scoped, tag = 'input window, operand 3, single buffered']
    #allocation3 [shape = 's32[2]{0}', space=sflag, size = 0x8, scoped, tag = 'scoped memory for tpu_custom_call.1']
    #allocation4 [shape = 's32[2]{0}', space=sflag, size = 0x8, scoped, tag = 'scoped memory for tpu_custom_call.1']
    #allocation5 [shape = 'u8[1024]{0}', space=vmem, size = 0x400, scoped, tag = 'input window, operand 8, single buffered']
    #allocation6 [shape = 's32[1]{0}', space=sflag, size = 0x4, scoped, tag = 'scoped memory for tpu_custom_call.1']
    #allocation7 [shape = 'u8[1024]{0}', space=vmem, size = 0x400, scoped, tag = 'input window, operand 9, single buffered']
    #allocation8 [shape = 'u8[1024]{0}', space=vmem, size = 0x400, scoped, tag = 'input window, operand 15, single buffered']
    #allocation9 [shape = 's32[1]{0}', space=sflag, size = 0x4, scoped, tag = 'scoped memory for tpu_custom_call.1']
    #allocation10 [shape = 'u8[1024]{0}', space=vmem, size = 0x400, scoped, tag = 'output window, operand 0']
    %23 = vsyncpa [#allocation3], 0
    %24 = vsyncpa [#allocation6], 0
    %25 = vsyncpa [#allocation9], 0
    %26 = vsyncpa [#allocation4], 0
    %s27 = scalar_lea.sflag [#allocation4], 1
    %28 = vsyncpa %s27, 0
    loop: start=0, step=1, limit=4
    $region2: #{tpu_custom_call.1} parent=1 // loop_pre_header
      _
    $region3: #{tpu_custom_call.1} parent=1 // loop_header
      %s30 = sphi 0, %s34
      %p31 = scmp.ge.s32.totalorder %s30, 4
      %s40 = sphi 0, %s42
      %s43 = sphi 0, %s40
      %s44 = sphi 0, %s43
      %s60 = sphi 0, %s44
      %s66 = sphi 0, %s68
      %s69 = sphi 0, %s66
      %s70 = sphi 0, %s69
      %s86 = sphi 0, %s70
      %s90 = sphi 0, %s90
      %s92 = sphi 0, %s90
      %s93 = sphi 0, %s92
      %s107 = sphi 0, %s93
      %s111 = sphi 0, %s111
      %s113 = sphi 0, %s111
      %s114 = sphi 0, %s113
      %s128 = sphi 0, %s114
      %s132 = sphi 0, %s132
      %s134 = sphi 0, %s132
      %s135 = sphi 0, %s134
      %s149 = sphi 0, %s135
      %s153 = sphi 0, %s153
      %s155 = sphi 0, %s153
      %s156 = sphi 0, %s155
      %s170 = sphi 0, %s156
      %s174 = sphi 0, %s174
      %s176 = sphi 0, %s174
      %s177 = sphi 0, %s176
      %s191 = sphi 0, %s177
      %s195 = sphi 0, %s195
      %s197 = sphi 0, %s195
      %s198 = sphi 0, %s197
      %s212 = sphi 0, %s198
      %s216 = sphi 0, %s216
      %s218 = sphi 0, %s216
      %s219 = sphi 0, %s218
      %s233 = sphi 0, %s219
      %s237 = sphi 0, %s237
      %s239 = sphi 0, %s237
      %s240 = sphi 0, %s239
      %s254 = sphi 0, %s240
      %s258 = sphi 0, %s258
      %s260 = sphi 0, %s258
      %s261 = sphi 0, %s260
      %s275 = sphi 0, %s261
      %s279 = sphi 0, %s279
      %s281 = sphi 0, %s279
      %s282 = sphi 0, %s281
      %s296 = sphi 0, %s282
      %s300 = sphi 0, %s300
      %s302 = sphi 0, %s300
      %s303 = sphi 0, %s302
      %s317 = sphi 0, %s303
      %s321 = sphi 0, %s321
      %s323 = sphi 0, %s321
      %s324 = sphi 0, %s323
      %s338 = sphi 0, %s324
      %s342 = sphi 0, %s342
      %s344 = sphi 0, %s342
      %s345 = sphi 0, %s344
      %s359 = sphi 0, %s345
      %s363 = sphi 0, %s363
      %s365 = sphi 0, %s363
      %s366 = sphi 0, %s365
      %s380 = sphi 0, %s366
      %s384 = sphi 0, %s384
      %s386 = sphi 0, %s384
      %s387 = sphi 0, %s386
      %s401 = sphi 0, %s387
      %s405 = sphi 0, %s405
      %s407 = sphi 0, %s405
      %s408 = sphi 0, %s407
      %s422 = sphi 0, %s408
      %s428 = sphi 0, %s430
      %s431 = sphi 0, %s428
      %s432 = sphi 0, %s431
      %s448 = sphi 0, %s432
    $region4: #{tpu_custom_call.1} parent=1 // loop_header_branch
      %33 = sbr.rel (%p31) target = $region8
    $region5: #{tpu_custom_call.1} parent=1 // loop_body
      %s35 = ssub.s32 %s30, 1
      %s36 = ssub.s32 %s30, 2
      %s37 = sadd.s32 %s30, 1
      %s38 = ssub.s32 %s30, %s37
      %p39 = scmp.eq.s32.totalorder %s38, 0
      %s41 = sadd.s32 %s40, 1
      %s42 = scalar_select %p39, %s40, %s41
      %p45 = pneg %p39
      %p46 = scmp.eq.s32.totalorder %s30, 1
      %p47 = por %p45, %p46
      %p48 = scmp.ne.s32.totalorder %s40, %s43
      %p49 = scmp.eq.s32.totalorder %s30, 0
      %p50 = por %p48, %p49
      %p51 = scmp.ne.s32.totalorder %s40, %s43
      %p52 = scmp.eq.s32.totalorder %s35, 1
      %p53 = por %p51, %p52
      %p54 = scmp.ne.s32.totalorder %s43, %s44
      %p55 = scmp.eq.s32.totalorder %s35, 0
      %p56 = por %p54, %p55
      %p57 = scmp.ne.s32.totalorder %s43, %s44
      %p58 = scmp.eq.s32.totalorder %s36, 1
      %p59 = por %p57, %p58
      %p61 = scmp.ne.s32.totalorder %s44, %s60
      %p62 = scmp.eq.s32.totalorder %s36, 0
      %p63 = por %p61, %p62
      %s64 = ssub.s32 %s30, %s37
      %p65 = scmp.eq.s32.totalorder %s64, 0
      %s67 = sadd.s32 %s66, 1
      %s68 = scalar_select %p65, %s66, %s67
      %p71 = pneg %p65
      %p72 = scmp.eq.s32.totalorder %s30, 1
      %p73 = por %p71, %p72
      %p74 = scmp.ne.s32.totalorder %s66, %s69
      %p75 = scmp.eq.s32.totalorder %s30, 0
      %p76 = por %p74, %p75
      %p77 = scmp.ne.s32.totalorder %s66, %s69
      %p78 = scmp.eq.s32.totalorder %s35, 1
      %p79 = por %p77, %p78
      %p80 = scmp.ne.s32.totalorder %s69, %s70
      %p81 = scmp.eq.s32.totalorder %s35, 0
      %p82 = por %p80, %p81
      %p83 = scmp.ne.s32.totalorder %s69, %s70
      %p84 = scmp.eq.s32.totalorder %s36, 1
      %p85 = por %p83, %p84
      %p87 = scmp.ne.s32.totalorder %s70, %s86
      %p88 = scmp.eq.s32.totalorder %s36, 0
      %p89 = por %p87, %p88
      %s91 = sadd.s32 %s90, 1
      %p94 = scmp.eq.s32.totalorder %s30, 1
      %p95 = scmp.ne.s32.totalorder %s90, %s92
      %p96 = scmp.eq.s32.totalorder %s30, 0
      %p97 = por %p95, %p96
      %p98 = scmp.ne.s32.totalorder %s90, %s92
      %p99 = scmp.eq.s32.totalorder %s35, 1
      %p100 = por %p98, %p99
      %p101 = scmp.ne.s32.totalorder %s92, %s93
      %p102 = scmp.eq.s32.totalorder %s35, 0
      %p103 = por %p101, %p102
      %p104 = scmp.ne.s32.totalorder %s92, %s93
      %p105 = scmp.eq.s32.totalorder %s36, 1
      %p106 = por %p104, %p105
      %p108 = scmp.ne.s32.totalorder %s93, %s107
      %p109 = scmp.eq.s32.totalorder %s36, 0
      %p110 = por %p108, %p109
      %s112 = sadd.s32 %s111, 1
      %p115 = scmp.eq.s32.totalorder %s30, 1
      %p116 = scmp.ne.s32.totalorder %s111, %s113
      %p117 = scmp.eq.s32.totalorder %s30, 0
      %p118 = por %p116, %p117
      %p119 = scmp.ne.s32.totalorder %s111, %s113
      %p120 = scmp.eq.s32.totalorder %s35, 1
      %p121 = por %p119, %p120
      %p122 = scmp.ne.s32.totalorder %s113, %s114
      %p123 = scmp.eq.s32.totalorder %s35, 0
      %p124 = por %p122, %p123
      %p125 = scmp.ne.s32.totalorder %s113, %s114
      %p126 = scmp.eq.s32.totalorder %s36, 1
      %p127 = por %p125, %p126
      %p129 = scmp.ne.s32.totalorder %s114, %s128
      %p130 = scmp.eq.s32.totalorder %s36, 0
      %p131 = por %p129, %p130
      %s133 = sadd.s32 %s132, 1
      %p136 = scmp.eq.s32.totalorder %s30, 1
      %p137 = scmp.ne.s32.totalorder %s132, %s134
      %p138 = scmp.eq.s32.totalorder %s30, 0
      %p139 = por %p137, %p138
      %p140 = scmp.ne.s32.totalorder %s132, %s134
      %p141 = scmp.eq.s32.totalorder %s35, 1
      %p142 = por %p140, %p141
      %p143 = scmp.ne.s32.totalorder %s134, %s135
      %p144 = scmp.eq.s32.totalorder %s35, 0
      %p145 = por %p143, %p144
      %p146 = scmp.ne.s32.totalorder %s134, %s135
      %p147 = scmp.eq.s32.totalorder %s36, 1
      %p148 = por %p146, %p147
      %p150 = scmp.ne.s32.totalorder %s135, %s149
      %p151 = scmp.eq.s32.totalorder %s36, 0
      %p152 = por %p150, %p151
      %s154 = sadd.s32 %s153, 1
      %p157 = scmp.eq.s32.totalorder %s30, 1
      %p158 = scmp.ne.s32.totalorder %s153, %s155
      %p159 = scmp.eq.s32.totalorder %s30, 0
      %p160 = por %p158, %p159
      %p161 = scmp.ne.s32.totalorder %s153, %s155
      %p162 = scmp.eq.s32.totalorder %s35, 1
      %p163 = por %p161, %p162
      %p164 = scmp.ne.s32.totalorder %s155, %s156
      %p165 = scmp.eq.s32.totalorder %s35, 0
      %p166 = por %p164, %p165
      %p167 = scmp.ne.s32.totalorder %s155, %s156
      %p168 = scmp.eq.s32.totalorder %s36, 1
      %p169 = por %p167, %p168
      %p171 = scmp.ne.s32.totalorder %s156, %s170
      %p172 = scmp.eq.s32.totalorder %s36, 0
      %p173 = por %p171, %p172
      %s175 = sadd.s32 %s174, 1
      %p178 = scmp.eq.s32.totalorder %s30, 1
      %p179 = scmp.ne.s32.totalorder %s174, %s176
      %p180 = scmp.eq.s32.totalorder %s30, 0
      %p181 = por %p179, %p180
      %p182 = scmp.ne.s32.totalorder %s174, %s176
      %p183 = scmp.eq.s32.totalorder %s35, 1
      %p184 = por %p182, %p183
      %p185 = scmp.ne.s32.totalorder %s176, %s177
      %p186 = scmp.eq.s32.totalorder %s35, 0
      %p187 = por %p185, %p186
      %p188 = scmp.ne.s32.totalorder %s176, %s177
      %p189 = scmp.eq.s32.totalorder %s36, 1
      %p190 = por %p188, %p189
      %p192 = scmp.ne.s32.totalorder %s177, %s191
      %p193 = scmp.eq.s32.totalorder %s36, 0
      %p194 = por %p192, %p193
      %s196 = sadd.s32 %s195, 1
      %p199 = scmp.eq.s32.totalorder %s30, 1
      %p200 = scmp.ne.s32.totalorder %s195, %s197
      %p201 = scmp.eq.s32.totalorder %s30, 0
      %p202 = por %p200, %p201
      %p203 = scmp.ne.s32.totalorder %s195, %s197
      %p204 = scmp.eq.s32.totalorder %s35, 1
      %p205 = por %p203, %p204
      %p206 = scmp.ne.s32.totalorder %s197, %s198
      %p207 = scmp.eq.s32.totalorder %s35, 0
      %p208 = por %p206, %p207
      %p209 = scmp.ne.s32.totalorder %s197, %s198
      %p210 = scmp.eq.s32.totalorder %s36, 1
      %p211 = por %p209, %p210
      %p213 = scmp.ne.s32.totalorder %s198, %s212
      %p214 = scmp.eq.s32.totalorder %s36, 0
      %p215 = por %p213, %p214
      %s217 = sadd.s32 %s216, 1
      %p220 = scmp.eq.s32.totalorder %s30, 1
      %p221 = scmp.ne.s32.totalorder %s216, %s218
      %p222 = scmp.eq.s32.totalorder %s30, 0
      %p223 = por %p221, %p222
      %p224 = scmp.ne.s32.totalorder %s216, %s218
      %p225 = scmp.eq.s32.totalorder %s35, 1
      %p226 = por %p224, %p225
      %p227 = scmp.ne.s32.totalorder %s218, %s219
      %p228 = scmp.eq.s32.totalorder %s35, 0
      %p229 = por %p227, %p228
      %p230 = scmp.ne.s32.totalorder %s218, %s219
      %p231 = scmp.eq.s32.totalorder %s36, 1
      %p232 = por %p230, %p231
      %p234 = scmp.ne.s32.totalorder %s219, %s233
      %p235 = scmp.eq.s32.totalorder %s36, 0
      %p236 = por %p234, %p235
      %s238 = sadd.s32 %s237, 1
      %p241 = scmp.eq.s32.totalorder %s30, 1
      %p242 = scmp.ne.s32.totalorder %s237, %s239
      %p243 = scmp.eq.s32.totalorder %s30, 0
      %p244 = por %p242, %p243
      %p245 = scmp.ne.s32.totalorder %s237, %s239
      %p246 = scmp.eq.s32.totalorder %s35, 1
      %p247 = por %p245, %p246
      %p248 = scmp.ne.s32.totalorder %s239, %s240
      %p249 = scmp.eq.s32.totalorder %s35, 0
      %p250 = por %p248, %p249
      %p251 = scmp.ne.s32.totalorder %s239, %s240
      %p252 = scmp.eq.s32.totalorder %s36, 1
      %p253 = por %p251, %p252
      %p255 = scmp.ne.s32.totalorder %s240, %s254
      %p256 = scmp.eq.s32.totalorder %s36, 0
      %p257 = por %p255, %p256
      %s259 = sadd.s32 %s258, 1
      %p262 = scmp.eq.s32.totalorder %s30, 1
      %p263 = scmp.ne.s32.totalorder %s258, %s260
      %p264 = scmp.eq.s32.totalorder %s30, 0
      %p265 = por %p263, %p264
      %p266 = scmp.ne.s32.totalorder %s258, %s260
      %p267 = scmp.eq.s32.totalorder %s35, 1
      %p268 = por %p266, %p267
      %p269 = scmp.ne.s32.totalorder %s260, %s261
      %p270 = scmp.eq.s32.totalorder %s35, 0
      %p271 = por %p269, %p270
      %p272 = scmp.ne.s32.totalorder %s260, %s261
      %p273 = scmp.eq.s32.totalorder %s36, 1
      %p274 = por %p272, %p273
      %p276 = scmp.ne.s32.totalorder %s261, %s275
      %p277 = scmp.eq.s32.totalorder %s36, 0
      %p278 = por %p276, %p277
      %s280 = sadd.s32 %s279, 1
      %p283 = scmp.eq.s32.totalorder %s30, 1
      %p284 = scmp.ne.s32.totalorder %s279, %s281
      %p285 = scmp.eq.s32.totalorder %s30, 0
      %p286 = por %p284, %p285
      %p287 = scmp.ne.s32.totalorder %s279, %s281
      %p288 = scmp.eq.s32.totalorder %s35, 1
      %p289 = por %p287, %p288
      %p290 = scmp.ne.s32.totalorder %s281, %s282
      %p291 = scmp.eq.s32.totalorder %s35, 0
      %p292 = por %p290, %p291
      %p293 = scmp.ne.s32.totalorder %s281, %s282
      %p294 = scmp.eq.s32.totalorder %s36, 1
      %p295 = por %p293, %p294
      %p297 = scmp.ne.s32.totalorder %s282, %s296
      %p298 = scmp.eq.s32.totalorder %s36, 0
      %p299 = por %p297, %p298
      %s301 = sadd.s32 %s300, 1
      %p304 = scmp.eq.s32.totalorder %s30, 1
      %p305 = scmp.ne.s32.totalorder %s300, %s302
      %p306 = scmp.eq.s32.totalorder %s30, 0
      %p307 = por %p305, %p306
      %p308 = scmp.ne.s32.totalorder %s300, %s302
      %p309 = scmp.eq.s32.totalorder %s35, 1
      %p310 = por %p308, %p309
      %p311 = scmp.ne.s32.totalorder %s302, %s303
      %p312 = scmp.eq.s32.totalorder %s35, 0
      %p313 = por %p311, %p312
      %p314 = scmp.ne.s32.totalorder %s302, %s303
      %p315 = scmp.eq.s32.totalorder %s36, 1
      %p316 = por %p314, %p315
      %p318 = scmp.ne.s32.totalorder %s303, %s317
      %p319 = scmp.eq.s32.totalorder %s36, 0
      %p320 = por %p318, %p319
      %s322 = sadd.s32 %s321, 1
      %p325 = scmp.eq.s32.totalorder %s30, 1
      %p326 = scmp.ne.s32.totalorder %s321, %s323
      %p327 = scmp.eq.s32.totalorder %s30, 0
      %p328 = por %p326, %p327
      %p329 = scmp.ne.s32.totalorder %s321, %s323
      %p330 = scmp.eq.s32.totalorder %s35, 1
      %p331 = por %p329, %p330
      %p332 = scmp.ne.s32.totalorder %s323, %s324
      %p333 = scmp.eq.s32.totalorder %s35, 0
      %p334 = por %p332, %p333
      %p335 = scmp.ne.s32.totalorder %s323, %s324
      %p336 = scmp.eq.s32.totalorder %s36, 1
      %p337 = por %p335, %p336
      %p339 = scmp.ne.s32.totalorder %s324, %s338
      %p340 = scmp.eq.s32.totalorder %s36, 0
      %p341 = por %p339, %p340
      %s343 = sadd.s32 %s342, 1
      %p346 = scmp.eq.s32.totalorder %s30, 1
      %p347 = scmp.ne.s32.totalorder %s342, %s344
      %p348 = scmp.eq.s32.totalorder %s30, 0
      %p349 = por %p347, %p348
      %p350 = scmp.ne.s32.totalorder %s342, %s344
      %p351 = scmp.eq.s32.totalorder %s35, 1
      %p352 = por %p350, %p351
      %p353 = scmp.ne.s32.totalorder %s344, %s345
      %p354 = scmp.eq.s32.totalorder %s35, 0
      %p355 = por %p353, %p354
      %p356 = scmp.ne.s32.totalorder %s344, %s345
      %p357 = scmp.eq.s32.totalorder %s36, 1
      %p358 = por %p356, %p357
      %p360 = scmp.ne.s32.totalorder %s345, %s359
      %p361 = scmp.eq.s32.totalorder %s36, 0
      %p362 = por %p360, %p361
      %s364 = sadd.s32 %s363, 1
      %p367 = scmp.eq.s32.totalorder %s30, 1
      %p368 = scmp.ne.s32.totalorder %s363, %s365
      %p369 = scmp.eq.s32.totalorder %s30, 0
      %p370 = por %p368, %p369
      %p371 = scmp.ne.s32.totalorder %s363, %s365
      %p372 = scmp.eq.s32.totalorder %s35, 1
      %p373 = por %p371, %p372
      %p374 = scmp.ne.s32.totalorder %s365, %s366
      %p375 = scmp.eq.s32.totalorder %s35, 0
      %p376 = por %p374, %p375
      %p377 = scmp.ne.s32.totalorder %s365, %s366
      %p378 = scmp.eq.s32.totalorder %s36, 1
      %p379 = por %p377, %p378
      %p381 = scmp.ne.s32.totalorder %s366, %s380
      %p382 = scmp.eq.s32.totalorder %s36, 0
      %p383 = por %p381, %p382
      %s385 = sadd.s32 %s384, 1
      %p388 = scmp.eq.s32.totalorder %s30, 1
      %p389 = scmp.ne.s32.totalorder %s384, %s386
      %p390 = scmp.eq.s32.totalorder %s30, 0
      %p391 = por %p389, %p390
      %p392 = scmp.ne.s32.totalorder %s384, %s386
      %p393 = scmp.eq.s32.totalorder %s35, 1
      %p394 = por %p392, %p393
      %p395 = scmp.ne.s32.totalorder %s386, %s387
      %p396 = scmp.eq.s32.totalorder %s35, 0
      %p397 = por %p395, %p396
      %p398 = scmp.ne.s32.totalorder %s386, %s387
      %p399 = scmp.eq.s32.totalorder %s36, 1
      %p400 = por %p398, %p399
      %p402 = scmp.ne.s32.totalorder %s387, %s401
      %p403 = scmp.eq.s32.totalorder %s36, 0
      %p404 = por %p402, %p403
      %s406 = sadd.s32 %s405, 1
      %p409 = scmp.eq.s32.totalorder %s30, 1
      %p410 = scmp.ne.s32.totalorder %s405, %s407
      %p411 = scmp.eq.s32.totalorder %s30, 0
      %p412 = por %p410, %p411
      %p413 = scmp.ne.s32.totalorder %s405, %s407
      %p414 = scmp.eq.s32.totalorder %s35, 1
      %p415 = por %p413, %p414
      %p416 = scmp.ne.s32.totalorder %s407, %s408
      %p417 = scmp.eq.s32.totalorder %s35, 0
      %p418 = por %p416, %p417
      %p419 = scmp.ne.s32.totalorder %s407, %s408
      %p420 = scmp.eq.s32.totalorder %s36, 1
      %p421 = por %p419, %p420
      %p423 = scmp.ne.s32.totalorder %s408, %s422
      %p424 = scmp.eq.s32.totalorder %s36, 0
      %p425 = por %p423, %p424
      %s426 = ssub.s32 %s30, %s37
      %p427 = scmp.eq.s32.totalorder %s426, 0
      %s429 = sadd.s32 %s428, 1
      %s430 = scalar_select %p427, %s428, %s429
      %p433 = pneg %p427
      %p434 = scmp.eq.s32.totalorder %s30, 1
      %p435 = por %p433, %p434
      %p436 = scmp.ne.s32.totalorder %s428, %s431
      %p437 = scmp.eq.s32.totalorder %s30, 0
      %p438 = por %p436, %p437
      %p439 = scmp.ne.s32.totalorder %s428, %s431
      %p440 = scmp.eq.s32.totalorder %s35, 1
      %p441 = por %p439, %p440
      %p442 = scmp.ne.s32.totalorder %s431, %s432
      %p443 = scmp.eq.s32.totalorder %s35, 0
      %p444 = por %p442, %p443
      %p445 = scmp.ne.s32.totalorder %s431, %s432
      %p446 = scmp.eq.s32.totalorder %s36, 1
      %p447 = por %p445, %p446
      %p449 = scmp.ne.s32.totalorder %s432, %s448
      %p450 = scmp.eq.s32.totalorder %s36, 0
      %p451 = por %p449, %p450
      %p452 = scmp.le.s32.totalorder 1, %s30
      %p453 = scmp.lt.s32.totalorder %s30, 3
      %p454 = pnand %p452, %p453
      %p455 = pneg %p454
      // Predicated region
      $region9: #{tpu_custom_call.1} parent=5 // pred_check
        _
      $region10: #{tpu_custom_call.1} parent=5 // pred_check_branch
        %457 = sbr.rel (%p454) target = $region12
      $region11: #{tpu_custom_call.1} parent=5 // pred_region
        %s458 = ssub.s32 %s30, 1
        // Predicated region
        $region13: #{tpu_custom_call.1} parent=11 // pred_check
          %p459 = pneg %p103
        $region14: #{tpu_custom_call.1} parent=11 // pred_check_branch
          %461 = sbr.rel (%p459) target = $region16
        $region15: #{tpu_custom_call.1} parent=11 // pred_region
          _
        $region16: #{tpu_custom_call.1} parent=11 // pred_fallthru
          _
        // Predicated region
        $region17: #{tpu_custom_call.1} parent=11 // pred_check
          %p462 = pneg %p124
        $region18: #{tpu_custom_call.1} parent=11 // pred_check_branch
          %464 = sbr.rel (%p462) target = $region20
        $region19: #{tpu_custom_call.1} parent=11 // pred_region
          %466 = vsyncadd [#allocation3], 0
          %s468 = sshll.u32 %s3, 4
          %s469 = int_to_ptr.hbm [resolvable:$true] %s468
          %s470 = sshll.u32 [#allocation2], 4
          %s471 = int_to_ptr.vmem [resolvable:$true] %s470
          %473 = dma.hbm_to_vmem [thread:$0]  %s469, 16, %s471, [#allocation3]
        $region20: #{tpu_custom_call.1} parent=11 // pred_fallthru
          _
        // Predicated region
        $region21: #{tpu_custom_call.1} parent=11 // pred_check
          %p474 = pneg %p145
        $region22: #{tpu_custom_call.1} parent=11 // pred_check_branch
          %476 = sbr.rel (%p474) target = $region24
        $region23: #{tpu_custom_call.1} parent=11 // pred_region
          _
        $region24: #{tpu_custom_call.1} parent=11 // pred_fallthru
          _
        // Predicated region
        $region25: #{tpu_custom_call.1} parent=11 // pred_check
          %p477 = pneg %p166
        $region26: #{tpu_custom_call.1} parent=11 // pred_check_branch
          %479 = sbr.rel (%p477) target = $region28
        $region27: #{tpu_custom_call.1} parent=11 // pred_region
          _
        $region28: #{tpu_custom_call.1} parent=11 // pred_fallthru
          _
        // Predicated region
        $region29: #{tpu_custom_call.1} parent=11 // pred_check
          %p480 = pneg %p187
        $region30: #{tpu_custom_call.1} parent=11 // pred_check_branch
          %482 = sbr.rel (%p480) target = $region32
        $region31: #{tpu_custom_call.1} parent=11 // pred_region
          _
        $region32: #{tpu_custom_call.1} parent=11 // pred_fallthru
          _
        // Predicated region
        $region33: #{tpu_custom_call.1} parent=11 // pred_check
          %p483 = pneg %p208
        $region34: #{tpu_custom_call.1} parent=11 // pred_check_branch
          %485 = sbr.rel (%p483) target = $region36
        $region35: #{tpu_custom_call.1} parent=11 // pred_region
          _
        $region36: #{tpu_custom_call.1} parent=11 // pred_fallthru
          _
        // Predicated region
        $region37: #{tpu_custom_call.1} parent=11 // pred_check
          %p486 = pneg %p229
        $region38: #{tpu_custom_call.1} parent=11 // pred_check_branch
          %488 = sbr.rel (%p486) target = $region40
        $region39: #{tpu_custom_call.1} parent=11 // pred_region
          %490 = vsyncadd [#allocation6], 0
          %s491 = sshll.u32 %s8, 4
          %s492 = int_to_ptr.hbm [resolvable:$true] %s491
          %s493 = sshll.u32 [#allocation5], 4
          %s494 = int_to_ptr.vmem [resolvable:$true] %s493
          %499 = dma.hbm_to_vmem [thread:$0]  %s492, 32, %s494, [#allocation6], 16, 16, 1
        $region40: #{tpu_custom_call.1} parent=11 // pred_fallthru
          _
        // Predicated region
        $region41: #{tpu_custom_call.1} parent=11 // pred_check
          %p500 = pneg %p250
        $region42: #{tpu_custom_call.1} parent=11 // pred_check_branch
          %502 = sbr.rel (%p500) target = $region44
        $region43: #{tpu_custom_call.1} parent=11 // pred_region
          %504 = vsyncadd [#allocation6], 0
          %s505 = sshll.u32 %s9, 4
          %s506 = int_to_ptr.hbm [resolvable:$true] %s505
          %s507 = sshll.u32 [#allocation7], 4
          %s508 = int_to_ptr.vmem [resolvable:$true] %s507
          %513 = dma.hbm_to_vmem [thread:$0]  %s506, 32, %s508, [#allocation6], 16, 16, 1
        $region44: #{tpu_custom_call.1} parent=11 // pred_fallthru
          _
        // Predicated region
        $region45: #{tpu_custom_call.1} parent=11 // pred_check
          %p514 = pneg %p271
        $region46: #{tpu_custom_call.1} parent=11 // pred_check_branch
          %516 = sbr.rel (%p514) target = $region48
        $region47: #{tpu_custom_call.1} parent=11 // pred_region
          _
        $region48: #{tpu_custom_call.1} parent=11 // pred_fallthru
          _
        // Predicated region
        $region49: #{tpu_custom_call.1} parent=11 // pred_check
          %p517 = pneg %p292
        $region50: #{tpu_custom_call.1} parent=11 // pred_check_branch
          %519 = sbr.rel (%p517) target = $region52
        $region51: #{tpu_custom_call.1} parent=11 // pred_region
          _
        $region52: #{tpu_custom_call.1} parent=11 // pred_fallthru
          _
        // Predicated region
        $region53: #{tpu_custom_call.1} parent=11 // pred_check
          %p520 = pneg %p313
        $region54: #{tpu_custom_call.1} parent=11 // pred_check_branch
          %522 = sbr.rel (%p520) target = $region56
        $region55: #{tpu_custom_call.1} parent=11 // pred_region
          _
        $region56: #{tpu_custom_call.1} parent=11 // pred_fallthru
          _
        // Predicated region
        $region57: #{tpu_custom_call.1} parent=11 // pred_check
          %p523 = pneg %p334
        $region58: #{tpu_custom_call.1} parent=11 // pred_check_branch
          %525 = sbr.rel (%p523) target = $region60
        $region59: #{tpu_custom_call.1} parent=11 // pred_region
          _
        $region60: #{tpu_custom_call.1} parent=11 // pred_fallthru
          _
        // Predicated region
        $region61: #{tpu_custom_call.1} parent=11 // pred_check
          %p526 = pneg %p355
        $region62: #{tpu_custom_call.1} parent=11 // pred_check_branch
          %528 = sbr.rel (%p526) target = $region64
        $region63: #{tpu_custom_call.1} parent=11 // pred_region
          _
        $region64: #{tpu_custom_call.1} parent=11 // pred_fallthru
          _
        // Predicated region
        $region65: #{tpu_custom_call.1} parent=11 // pred_check
          %p529 = pneg %p376
        $region66: #{tpu_custom_call.1} parent=11 // pred_check_branch
          %531 = sbr.rel (%p529) target = $region68
        $region67: #{tpu_custom_call.1} parent=11 // pred_region
          %533 = vsyncadd [#allocation9], 0
          %s534 = sshll.u32 %s15, 4
          %s535 = int_to_ptr.hbm [resolvable:$true] %s534
          %s536 = sshll.u32 [#allocation8], 4
          %s537 = int_to_ptr.vmem [resolvable:$true] %s536
          %542 = dma.hbm_to_vmem [thread:$0]  %s535, 32, %s537, [#allocation9], 16, 16, 1
        $region68: #{tpu_custom_call.1} parent=11 // pred_fallthru
          _
        // Predicated region
        $region69: #{tpu_custom_call.1} parent=11 // pred_check
          %p543 = pneg %p397
        $region70: #{tpu_custom_call.1} parent=11 // pred_check_branch
          %545 = sbr.rel (%p543) target = $region72
        $region71: #{tpu_custom_call.1} parent=11 // pred_region
          _
        $region72: #{tpu_custom_call.1} parent=11 // pred_fallthru
          _
        // Predicated region
        $region73: #{tpu_custom_call.1} parent=11 // pred_check
          %p546 = pneg %p418
        $region74: #{tpu_custom_call.1} parent=11 // pred_check_branch
          %548 = sbr.rel (%p546) target = $region76
        $region75: #{tpu_custom_call.1} parent=11 // pred_region
          _
        $region76: #{tpu_custom_call.1} parent=11 // pred_fallthru
          _
      $region12: #{tpu_custom_call.1} parent=5 // pred_fallthru
        _
      %p549 = scmp.lt.s32.totalorder %s30, 2
      // Predicated region
      $region77: #{tpu_custom_call.1} parent=5 // pred_check
        %p550 = pneg %p549
      $region78: #{tpu_custom_call.1} parent=5 // pred_check_branch
        %552 = sbr.rel (%p550) target = $region80
      $region79: #{tpu_custom_call.1} parent=5 // pred_region
        // Predicated region
        $region81: #{tpu_custom_call.1} parent=79 // pred_check
          %p553 = pneg %p50
        $region82: #{tpu_custom_call.1} parent=79 // pred_check_branch
          %555 = sbr.rel (%p553) target = $region84
        $region83: #{tpu_custom_call.1} parent=79 // pred_region
          %p556 = scmp.lt.s32.totalorder %s30, 1
          %s557 = scalar_select %p556, %s30, 1
          %s558 = smul.addr %s557, 8
          %s559 = scalar_lea.vmem %s0, %s558
        $region84: #{tpu_custom_call.1} parent=79 // pred_fallthru
          _
        // Predicated region
        $region85: #{tpu_custom_call.1} parent=79 // pred_check
          %p560 = pneg %p76
        $region86: #{tpu_custom_call.1} parent=79 // pred_check_branch
          %562 = sbr.rel (%p560) target = $region88
        $region87: #{tpu_custom_call.1} parent=79 // pred_region
          %p563 = scmp.lt.s32.totalorder %s30, 1
          %s564 = scalar_select %p563, %s30, 1
          %s565 = scalar_lea.vmem %s1, %s564
        $region88: #{tpu_custom_call.1} parent=79 // pred_fallthru
          _
      $region80: #{tpu_custom_call.1} parent=5 // pred_fallthru
        _
      %p566 = scmp.le.s32.totalorder 1, %s30
      %p567 = scmp.lt.s32.totalorder %s30, 3
      %p568 = pnand %p566, %p567
      %p569 = pneg %p568
      // Predicated region
      $region89: #{tpu_custom_call.1} parent=5 // pred_check
        _
      $region90: #{tpu_custom_call.1} parent=5 // pred_check_branch
        %571 = sbr.rel (%p568) target = $region92
      $region91: #{tpu_custom_call.1} parent=5 // pred_region
        %s572 = ssub.s32 %s30, 1
        // Predicated region
        $region93: #{tpu_custom_call.1} parent=91 // pred_check
          %p573 = pneg %p124
        $region94: #{tpu_custom_call.1} parent=91 // pred_check_branch
          %575 = sbr.rel (%p573) target = $region96
        $region95: #{tpu_custom_call.1} parent=91 // pred_region
          %577 = dma.done [#allocation3], 16
        $region96: #{tpu_custom_call.1} parent=91 // pred_fallthru
          _
        // Predicated region
        $region97: #{tpu_custom_call.1} parent=91 // pred_check
          %p578 = pneg %p229
        $region98: #{tpu_custom_call.1} parent=91 // pred_check_branch
          %580 = sbr.rel (%p578) target = $region100
        $region99: #{tpu_custom_call.1} parent=91 // pred_region
          %582 = dma.done [#allocation6], 32
        $region100: #{tpu_custom_call.1} parent=91 // pred_fallthru
          _
        // Predicated region
        $region101: #{tpu_custom_call.1} parent=91 // pred_check
          %p583 = pneg %p250
        $region102: #{tpu_custom_call.1} parent=91 // pred_check_branch
          %585 = sbr.rel (%p583) target = $region104
        $region103: #{tpu_custom_call.1} parent=91 // pred_region
          %587 = dma.done [#allocation6], 32
        $region104: #{tpu_custom_call.1} parent=91 // pred_fallthru
          _
        // Predicated region
        $region105: #{tpu_custom_call.1} parent=91 // pred_check
          %p588 = pneg %p376
        $region106: #{tpu_custom_call.1} parent=91 // pred_check_branch
          %590 = sbr.rel (%p588) target = $region108
        $region107: #{tpu_custom_call.1} parent=91 // pred_region
          %592 = dma.done [#allocation9], 32
        $region108: #{tpu_custom_call.1} parent=91 // pred_fallthru
          _
        %p593 = scmp.lt.s32.totalorder %s35, 1
        %s594 = scalar_select %p593, %s35, 1
        %s595 = smul.addr %s594, 8
        %s596 = scalar_lea.vmem %s0, %s595
        %p597 = pneg %p56
        %p598 = pneg %p53
        %p599 = scmp.lt.s32.totalorder %s35, 1
        %s600 = scalar_select %p599, %s35, 1
        %s601 = scalar_lea.vmem %s1, %s600
        %p602 = pneg %p82
        %p603 = pneg %p79
        %p604 = pneg %p103
        %p605 = pneg %p100
        %p606 = pneg %p124
        %p607 = pneg %p121
        %p608 = pneg %p145
        %p609 = pneg %p142
        %p610 = pneg %p166
        %p611 = pneg %p163
        %p612 = pneg %p187
        %p613 = pneg %p184
        %p614 = pneg %p208
        %p615 = pneg %p205
        %p616 = pneg %p229
        %p617 = pneg %p226
        %p618 = pneg %p250
        %p619 = pneg %p247
        %p620 = pneg %p271
        %p621 = pneg %p268
        %p622 = pneg %p292
        %p623 = pneg %p289
        %p624 = pneg %p313
        %p625 = pneg %p310
        %p626 = pneg %p334
        %p627 = pneg %p331
        %p628 = pneg %p355
        %p629 = pneg %p352
        %p630 = pneg %p376
        %p631 = pneg %p373
        %p632 = pneg %p397
        %p633 = pneg %p394
        %p634 = pneg %p418
        %p635 = pneg %p415
        %p636 = pneg %p444
        %p637 = pneg %p441
        %s638 = sand.u32 %s431, 1
        %s639 = scalar_lea.sflag [#allocation4], %s638
        %s640 = sand.u32 %s431, 1
        %s641 = scalar_lea.vmem [#allocation10], %s640
        %p642 = scmp.lt.s32.totalorder %s35, 1
        %s643 = scalar_select %p642, %s35, 1
        %s644 = smul.addr %s643, 8
        %s645 = scalar_lea.vmem %s0, %s644
        %p646 = scmp.lt.s32.totalorder %s35, 1
        %s647 = scalar_select %p646, %s35, 1
        %s648 = scalar_lea.vmem %s1, %s647
        %v650 = vld [vmem:[%s645] sm:$0xff]
        %v651 = vld [vmem:[%s648] sm:$0x1]
        %v652 = vld [vmem:[%s2] sm:$0x1]
        %v653 = vld [vmem:[#allocation2] sm:$0x1]
        %vm654 = vcmask 261120
        %v655 = vsel %vm654, %v650, 0.0
        %656 = vadd.xlane.f32.xlu0 %v655
        %v657 = vpop.xlane.xlu0 %656
        %v658 = vrcp.pop 32.0
        %v659 = vmul.f32 32.0, %v658
        %v660 = vsub.f32 1.0, %v659
        %v661 = vmul.f32 %v658, %v660
        %v662 = vadd.f32 %v658, %v661
        %vm663 = vweird.f32 %v658
        %v664 = vsel %vm663, %v658, %v662
        %v665 = vmul.f32 %v657, %v664
        %v666 = vsub.f32 %v650, %v665
        %v667 = vmul.f32 %v666, %v666
        %v668 = vsel %vm654, %v667, 0.0
        %669 = vadd.xlane.f32.xlu0 %v668
        %v670 = vpop.xlane.xlu0 %669
        %v671 = vmul.f32 %v670, %v664
        %v672 = vadd.f32 %v671, 1e-12
        %v673 = vrsqrt.pop %v672
        %v674 = vmul.f32 %v673, %v672
        %v675 = vmul.f32 %v674, %v673
        %v676 = vmul.f32 0.5, %v675
        %v677 = vsub.f32 1.5, %v676
        %v678 = vmul.f32 %v673, %v677
        %vm679 = vweird.f32 %v672
        %vm680 = vweird.f32 %v673
        %vm681 = vmor %vm679, %vm680
        %v682 = vsel %vm681, %v673, %v678
        %v683 = vmul.f32 %v666, %v682
        %v685 = vperm.slane %v652, 0
        %v687 = vmul.f32 %v683, %v685
        %v689 = vperm.slane %v653, 0
        %v691 = vadd.f32 %v687, %v689
        %v692 = vld [vmem:[%s4] sm:$0xf]
        %v693 = vld [vmem:[%s4 + $0x4] sm:$0xf]
        %v694 = vld [vmem:[%s4 + $0x8] sm:$0xf]
        %v695 = vld [vmem:[%s4 + $0xc] sm:$0xf]
        %v696 = vpack.c.bf16 %v691, %v691
        %v697 = vld [vmem:[%s5] sm:$0x1]
        %v699 = vperm.slane %v697, 0
        %v705 = vunpack.c.l.b16 %v692
        %v706 = vunpack.c.l.b16 %v693
        %v707 = vunpack.c.l.b16 %v694
        %v708 = vunpack.c.l.b16 %v695
        %v709 = vpack.c.b16 %v706, %v705
        %v710 = vpack.c.b16 %v708, %v707
        %v714 = vsel %vm654, %v696, 0
        %716 = vmatpush.bf16.msra.mxu0 0
        %717 = vmatpush.bf16.msra.mxu0 0
        %718 = vmatpush.bf16.msra.mxu0 0
        %719 = vmatpush.bf16.msra.mxu0 0
        %720 = vmatpush.bf16.msra.mxu0 0
        %721 = vmatpush.bf16.msra.mxu0 0
        %722 = vmatpush.bf16.msra.mxu0 %v710
        %723 = vmatpush.bf16.msra.mxu0 %v709
        %724 = vmatmul.bf16.gmra.mxu0 %v714
        %v725 = vpop.f32.mrf.mxu0
        %v726 = vadd.f32 %v699, %v725
        %v727 = vpop.f32.mrf.mxu0
        %728 = vdwg.mxu0
        %v729 = vpack.c.bf16 %v726, %v726
        %731 = vrot.lane.b32.xlu0 %v729, 96
        %v732 = vpop.permute.xlu0 %731
        %vm733 = vcmask 130048
        %v735 = vsel %vm733, %v729, 0
        %v738 = vsel %vm733, %v732, 0
        %740 = vmatpush.bf16.xpose.msra.mxu0 0
        %741 = vmatpush.bf16.xpose.msra.mxu0 0
        %742 = vmatpush.bf16.xpose.msra.mxu0 0
        %743 = vmatpush.bf16.xpose.msra.mxu0 0
        %744 = vmatpush.bf16.xpose.msra.mxu0 0
        %745 = vmatpush.bf16.xpose.msra.mxu0 0
        %746 = vmatpush.bf16.xpose.msra.mxu0 0
        %747 = vmatpush.bf16.xpose.msra.mxu0 %v738
        %748 = vmatmul.bf16.gmra.mxu0 %v735
        %v749 = vpop.f32.mrf.mxu0
        %v750 = vadd.f32 0.0, %v749
        %v751 = vpop.f32.mrf.mxu0
        %752 = vdwg.mxu0
        %v753 = vmul.f32 %v750, 0.25
        %v755 = vperm.slane %v651, 0
        %v757 = vadd.f32 %v753, %v755
        %vm758 = vcmask 64512
        %v759 = vsel %vm758, %v757, -inf
        %760 = vmax.xlane.f32.xlu0 %v759
        %v761 = vpop.xlane.xlu0 %760
        %v762 = vsub.f32 %v757, %v761
        %v763 = vmul.f32 %v762, 1.442695
        %v764 = vpow.pop %v763
        %v765 = vsel %vm758, %v764, 0.0
        %766 = vadd.xlane.f32.xlu0 %v765
        %v767 = vpop.xlane.xlu0 %766
        %v768 = vrcp.pop %v767
        %v769 = vmul.f32 %v764, %v768
        %v770 = vpack.c.bf16 %v769, %v769
        %771 = vrot.lane.b32.xlu0 %v729, 64
        %v772 = vpop.permute.xlu0 %771
        %v774 = vsel %vm758, %v770, 0
        %vm776 = vcmask 1043456
        %v778 = vsel %vm776, %v772, 0
        %780 = vmatpush.bf16.msra.mxu0 0
        %781 = vmatpush.bf16.msra.mxu0 0
        %782 = vmatpush.bf16.msra.mxu0 0
        %783 = vmatpush.bf16.msra.mxu0 0
        %784 = vmatpush.bf16.msra.mxu0 0
        %785 = vmatpush.bf16.msra.mxu0 0
        %786 = vmatpush.bf16.msra.mxu0 0
        %787 = vmatpush.bf16.msra.mxu0 %v778
        %788 = vmatmul.bf16.gmra.mxu0 %v774
        %v789 = vpop.f32.mrf.mxu0
        %v790 = vadd.f32 0.0, %v789
        %v791 = vpop.f32.mrf.mxu0
        %792 = vdwg.mxu0
        %793 = vrot.lane.b32.xlu0 %v729, 112
        %v794 = vpop.permute.xlu0 %793
        %795 = vrot.lane.b32.xlu0 %v729, 80
        %v796 = vpop.permute.xlu0 %795
        %v798 = vsel %vm733, %v794, 0
        %v801 = vsel %vm733, %v796, 0
        %803 = vmatpush.bf16.xpose.msra.mxu0 0
        %804 = vmatpush.bf16.xpose.msra.mxu0 0
        %805 = vmatpush.bf16.xpose.msra.mxu0 0
        %806 = vmatpush.bf16.xpose.msra.mxu0 0
        %807 = vmatpush.bf16.xpose.msra.mxu0 0
        %808 = vmatpush.bf16.xpose.msra.mxu0 0
        %809 = vmatpush.bf16.xpose.msra.mxu0 0
        %810 = vmatpush.bf16.xpose.msra.mxu0 %v801
        %811 = vmatmul.bf16.gmra.mxu0 %v798
        %v812 = vpop.f32.mrf.mxu0
        %v813 = vadd.f32 0.0, %v812
        %v814 = vpop.f32.mrf.mxu0
        %815 = vdwg.mxu0
        %v816 = vmul.f32 %v813, 0.25
        %v817 = vadd.f32 %v816, %v755
        %v818 = vsel %vm758, %v817, -inf
        %819 = vmax.xlane.f32.xlu0 %v818
        %v820 = vpop.xlane.xlu0 %819
        %v821 = vsub.f32 %v817, %v820
        %v822 = vmul.f32 %v821, 1.442695
        %v823 = vpow.pop %v822
        %v824 = vsel %vm758, %v823, 0.0
        %825 = vadd.xlane.f32.xlu0 %v824
        %v826 = vpop.xlane.xlu0 %825
        %v827 = vrcp.pop %v826
        %v828 = vmul.f32 %v823, %v827
        %v829 = vpack.c.bf16 %v828, %v828
        %830 = vrot.lane.b32.xlu0 %v729, 48
        %v831 = vpop.permute.xlu0 %830
        %v833 = vsel %vm758, %v829, 0
        %v836 = vsel %vm776, %v831, 0
        %838 = vmatpush.bf16.msra.mxu0 0
        %839 = vmatpush.bf16.msra.mxu0 0
        %840 = vmatpush.bf16.msra.mxu0 0
        %841 = vmatpush.bf16.msra.mxu0 0
        %842 = vmatpush.bf16.msra.mxu0 0
        %843 = vmatpush.bf16.msra.mxu0 0
        %844 = vmatpush.bf16.msra.mxu0 0
        %845 = vmatpush.bf16.msra.mxu0 %v836
        %846 = vmatmul.bf16.gmra.mxu0 %v833
        %v847 = vpop.f32.mrf.mxu0
        %v848 = vadd.f32 0.0, %v847
        %v849 = vpop.f32.mrf.mxu0
        %850 = vdwg.mxu0
        %852 = vrot.lane.b32.xlu0 %v848, 16
        %v853 = vpop.permute.xlu0 %852
        %v855 = vsel %vm733, %v790, %v853
        %v856 = vld [vmem:[%s6] sm:$0xf]
        %v857 = vld [vmem:[%s6 + $0x4] sm:$0xf]
        %v858 = vld [vmem:[%s6 + $0x8] sm:$0xf]
        %v859 = vld [vmem:[%s6 + $0xc] sm:$0xf]
        %v860 = vpack.c.bf16 %v855, %v855
        %v861 = vld [vmem:[%s7] sm:$0x1]
        %v863 = vperm.slane %v861, 0
        %v869 = vunpack.c.l.b16 %v856
        %v870 = vunpack.c.l.b16 %v857
        %v871 = vunpack.c.l.b16 %v858
        %v872 = vunpack.c.l.b16 %v859
        %v873 = vpack.c.b16 %v870, %v869
        %v874 = vpack.c.b16 %v872, %v871
        %v878 = vsel %vm654, %v860, 0
        %880 = vmatpush.bf16.msra.mxu0 0
        %881 = vmatpush.bf16.msra.mxu0 0
        %882 = vmatpush.bf16.msra.mxu0 0
        %883 = vmatpush.bf16.msra.mxu0 0
        %884 = vmatpush.bf16.msra.mxu0 0
        %885 = vmatpush.bf16.msra.mxu0 0
        %886 = vmatpush.bf16.msra.mxu0 %v874
        %887 = vmatpush.bf16.msra.mxu0 %v873
        %888 = vmatmul.bf16.gmra.mxu0 %v878
        %v889 = vpop.f32.mrf.mxu0
        %v890 = vadd.f32 %v863, %v889
        %v891 = vpop.f32.mrf.mxu0
        %892 = vdwg.mxu0
        %v893 = vadd.f32 %v890, %v691
        %v894 = vld [vmem:[#allocation5] sm:$0x1]
        %v895 = vld [vmem:[#allocation7] sm:$0x1]
        %v896 = vsel %vm654, %v893, 0.0
        %897 = vadd.xlane.f32.xlu0 %v896
        %v898 = vpop.xlane.xlu0 %897
        %v899 = vmul.f32 %v898, %v664
        %v900 = vsub.f32 %v893, %v899
        %v901 = vmul.f32 %v900, %v900
        %v902 = vsel %vm654, %v901, 0.0
        %903 = vadd.xlane.f32.xlu0 %v902
        %v904 = vpop.xlane.xlu0 %903
        %v905 = vmul.f32 %v904, %v664
        %v906 = vadd.f32 %v905, 1e-12
        %v907 = vrsqrt.pop %v906
        %v908 = vmul.f32 %v907, %v906
        %v909 = vmul.f32 %v908, %v907
        %v910 = vmul.f32 0.5, %v909
        %v911 = vsub.f32 1.5, %v910
        %v912 = vmul.f32 %v907, %v911
        %vm913 = vweird.f32 %v906
        %vm914 = vweird.f32 %v907
        %vm915 = vmor %vm913, %vm914
        %v916 = vsel %vm915, %v907, %v912
        %v917 = vmul.f32 %v900, %v916
        %v919 = vperm.slane %v894, 0
        %v921 = vmul.f32 %v917, %v919
        %v923 = vperm.slane %v895, 0
        %v925 = vadd.f32 %v921, %v923
        %v926 = vld [vmem:[%s10] sm:$0xf]
        %v927 = vld [vmem:[%s10 + $0x4] sm:$0xf]
        %v928 = vld [vmem:[%s10 + $0x8] sm:$0xf]
        %v929 = vld [vmem:[%s10 + $0xc] sm:$0xf]
        %v930 = vpack.c.bf16 %v925, %v925
        %v931 = vld [vmem:[%s11] sm:$0x1]
        %v933 = vperm.slane %v931, 0
        %v939 = vunpack.c.l.b16 %v926
        %v940 = vunpack.c.l.b16 %v927
        %v941 = vunpack.c.l.b16 %v928
        %v942 = vunpack.c.l.b16 %v929
        %v943 = vpack.c.b16 %v940, %v939
        %v944 = vpack.c.b16 %v942, %v941
        %v948 = vsel %vm654, %v930, 0
        %950 = vmatpush.bf16.msra.mxu0 0
        %951 = vmatpush.bf16.msra.mxu0 0
        %952 = vmatpush.bf16.msra.mxu0 0
        %953 = vmatpush.bf16.msra.mxu0 0
        %954 = vmatpush.bf16.msra.mxu0 0
        %955 = vmatpush.bf16.msra.mxu0 0
        %956 = vmatpush.bf16.msra.mxu0 %v944
        %957 = vmatpush.bf16.msra.mxu0 %v943
        %958 = vmatmul.bf16.gmra.mxu0 %v948
        %v959 = vpop.f32.mrf.mxu0
        %v960 = vadd.f32 %v933, %v959
        %v961 = vpop.f32.mrf.mxu0
        %962 = vdwg.mxu0
        %v963 = vmul.f32 %v960, 0.5
        %v964 = vmul.f32 %v960, 0.044715
        %v965 = vmul.f32 %v964, %v960
        %v966 = vmul.f32 %v965, %v960
        %v967 = vadd.f32 %v960, %v966
        %v968 = vmul.f32 %v967, 0.7978846
        %v969 = vtanh.pop %v968
        %v970 = vadd.f32 %v969, 1.0
        %v971 = vmul.f32 %v963, %v970
        %v972 = vld [vmem:[%s12] sm:$0xf]
        %v973 = vld [vmem:[%s12 + $0x4] sm:$0xf]
        %v974 = vld [vmem:[%s12 + $0x8] sm:$0xf]
        %v975 = vld [vmem:[%s12 + $0xc] sm:$0xf]
        %v976 = vld [vmem:[%s12 + $0x10] sm:$0xf]
        %v977 = vld [vmem:[%s12 + $0x14] sm:$0xf]
        %v978 = vld [vmem:[%s12 + $0x18] sm:$0xf]
        %v979 = vld [vmem:[%s12 + $0x1c] sm:$0xf]
        %v980 = vpack.c.bf16 %v971, %v971
        %v981 = vld [vmem:[%s13] sm:$0x1]
        %v983 = vperm.slane %v981, 0
        %v993 = vunpack.c.l.b16 %v972
        %v994 = vunpack.c.l.b16 %v973
        %v995 = vunpack.c.l.b16 %v974
        %v996 = vunpack.c.l.b16 %v975
        %v997 = vunpack.c.l.b16 %v976
        %v998 = vunpack.c.l.b16 %v977
        %v999 = vunpack.c.l.b16 %v978
        %v1000 = vunpack.c.l.b16 %v979
        %v1001 = vpack.c.b16 %v994, %v993
        %v1002 = vpack.c.b16 %v996, %v995
        %v1003 = vpack.c.b16 %v998, %v997
        %v1004 = vpack.c.b16 %v1000, %v999
        %vm1009 = vcmask 523264
        %v1011 = vsel %vm1009, %v980, 0
        %1013 = vmatpush.bf16.msra.mxu0 0
        %1014 = vmatpush.bf16.msra.mxu0 0
        %1015 = vmatpush.bf16.msra.mxu0 0
        %1016 = vmatpush.bf16.msra.mxu0 0
        %1017 = vmatpush.bf16.msra.mxu0 %v1004
        %1018 = vmatpush.bf16.msra.mxu0 %v1003
        %1019 = vmatpush.bf16.msra.mxu0 %v1002
        %1020 = vmatpush.bf16.msra.mxu0 %v1001
        %1021 = vmatmul.bf16.gmra.mxu0 %v1011
        %v1022 = vpop.f32.mrf.mxu0
        %v1023 = vadd.f32 %v983, %v1022
        %v1024 = vpop.f32.mrf.mxu0
        %1025 = vdwg.mxu0
        %v1026 = vadd.f32 %v1023, %v925
        %v1027 = vld [vmem:[%s14] sm:$0x1]
        %v1028 = vld [vmem:[#allocation8] sm:$0x1]
        %v1029 = vsel %vm654, %v1026, 0.0
        %1030 = vadd.xlane.f32.xlu0 %v1029
        %v1031 = vpop.xlane.xlu0 %1030
        %v1032 = vmul.f32 %v1031, %v664
        %v1033 = vsub.f32 %v1026, %v1032
        %v1034 = vmul.f32 %v1033, %v1033
        %v1035 = vsel %vm654, %v1034, 0.0
        %1036 = vadd.xlane.f32.xlu0 %v1035
        %v1037 = vpop.xlane.xlu0 %1036
        %v1038 = vmul.f32 %v1037, %v664
        %v1039 = vadd.f32 %v1038, 1e-12
        %v1040 = vrsqrt.pop %v1039
        %v1041 = vmul.f32 %v1040, %v1039
        %v1042 = vmul.f32 %v1041, %v1040
        %v1043 = vmul.f32 0.5, %v1042
        %v1044 = vsub.f32 1.5, %v1043
        %v1045 = vmul.f32 %v1040, %v1044
        %vm1046 = vweird.f32 %v1039
        %vm1047 = vweird.f32 %v1040
        %vm1048 = vmor %vm1046, %vm1047
        %v1049 = vsel %vm1048, %v1040, %v1045
        %v1050 = vmul.f32 %v1033, %v1049
        %v1052 = vperm.slane %v1027, 0
        %v1054 = vmul.f32 %v1050, %v1052
        %v1056 = vperm.slane %v1028, 0
        %v1058 = vadd.f32 %v1054, %v1056
        %s1059 = scalar_lea.vmem %s4, 16
        %v1060 = vld [vmem:[%s1059] sm:$0xf]
        %v1061 = vld [vmem:[%s1059 + $0x4] sm:$0xf]
        %v1062 = vld [vmem:[%s1059 + $0x8] sm:$0xf]
        %v1063 = vld [vmem:[%s1059 + $0xc] sm:$0xf]
        %v1064 = vpack.c.bf16 %v1058, %v1058
        %s1065 = scalar_lea.vmem %s5, 1
        %v1066 = vld [vmem:[%s1065] sm:$0x1]
        %v1068 = vperm.slane %v1066, 0
        %v1074 = vunpack.c.l.b16 %v1060
        %v1075 = vunpack.c.l.b16 %v1061
        %v1076 = vunpack.c.l.b16 %v1062
        %v1077 = vunpack.c.l.b16 %v1063
        %v1078 = vpack.c.b16 %v1075, %v1074
        %v1079 = vpack.c.b16 %v1077, %v1076
        %v1083 = vsel %vm654, %v1064, 0
        %1085 = vmatpush.bf16.msra.mxu0 0
        %1086 = vmatpush.bf16.msra.mxu0 0
        %1087 = vmatpush.bf16.msra.mxu0 0
        %1088 = vmatpush.bf16.msra.mxu0 0
        %1089 = vmatpush.bf16.msra.mxu0 0
        %1090 = vmatpush.bf16.msra.mxu0 0
        %1091 = vmatpush.bf16.msra.mxu0 %v1079
        %1092 = vmatpush.bf16.msra.mxu0 %v1078
        %1093 = vmatmul.bf16.gmra.mxu0 %v1083
        %v1094 = vpop.f32.mrf.mxu0
        %v1095 = vadd.f32 %v1068, %v1094
        %v1096 = vpop.f32.mrf.mxu0
        %1097 = vdwg.mxu0
        %v1098 = vpack.c.bf16 %v1095, %v1095
        %1100 = vrot.lane.b32.xlu0 %v1098, 96
        %v1101 = vpop.permute.xlu0 %1100
        %v1103 = vsel %vm733, %v1098, 0
        %v1106 = vsel %vm733, %v1101, 0
        %1108 = vmatpush.bf16.xpose.msra.mxu0 0
        %1109 = vmatpush.bf16.xpose.msra.mxu0 0
        %1110 = vmatpush.bf16.xpose.msra.mxu0 0
        %1111 = vmatpush.bf16.xpose.msra.mxu0 0
        %1112 = vmatpush.bf16.xpose.msra.mxu0 0
        %1113 = vmatpush.bf16.xpose.msra.mxu0 0
        %1114 = vmatpush.bf16.xpose.msra.mxu0 0
        %1115 = vmatpush.bf16.xpose.msra.mxu0 %v1106
        %1116 = vmatmul.bf16.gmra.mxu0 %v1103
        %v1117 = vpop.f32.mrf.mxu0
        %v1118 = vadd.f32 0.0, %v1117
        %v1119 = vpop.f32.mrf.mxu0
        %1120 = vdwg.mxu0
        %v1121 = vmul.f32 %v1118, 0.25
        %v1122 = vadd.f32 %v1121, %v755
        %v1123 = vsel %vm758, %v1122, -inf
        %1124 = vmax.xlane.f32.xlu0 %v1123
        %v1125 = vpop.xlane.xlu0 %1124
        %v1126 = vsub.f32 %v1122, %v1125
        %v1127 = vmul.f32 %v1126, 1.442695
        %v1128 = vpow.pop %v1127
        %v1129 = vsel %vm758, %v1128, 0.0
        %1130 = vadd.xlane.f32.xlu0 %v1129
        %v1131 = vpop.xlane.xlu0 %1130
        %v1132 = vrcp.pop %v1131
        %v1133 = vmul.f32 %v1128, %v1132
        %v1134 = vpack.c.bf16 %v1133, %v1133
        %1135 = vrot.lane.b32.xlu0 %v1098, 64
        %v1136 = vpop.permute.xlu0 %1135
        %v1138 = vsel %vm758, %v1134, 0
        %v1141 = vsel %vm776, %v1136, 0
        %1143 = vmatpush.bf16.msra.mxu0 0
        %1144 = vmatpush.bf16.msra.mxu0 0
        %1145 = vmatpush.bf16.msra.mxu0 0
        %1146 = vmatpush.bf16.msra.mxu0 0
        %1147 = vmatpush.bf16.msra.mxu0 0
        %1148 = vmatpush.bf16.msra.mxu0 0
        %1149 = vmatpush.bf16.msra.mxu0 0
        %1150 = vmatpush.bf16.msra.mxu0 %v1141
        %1151 = vmatmul.bf16.gmra.mxu0 %v1138
        %v1152 = vpop.f32.mrf.mxu0
        %v1153 = vadd.f32 0.0, %v1152
        %v1154 = vpop.f32.mrf.mxu0
        %1155 = vdwg.mxu0
        %1156 = vrot.lane.b32.xlu0 %v1098, 112
        %v1157 = vpop.permute.xlu0 %1156
        %1158 = vrot.lane.b32.xlu0 %v1098, 80
        %v1159 = vpop.permute.xlu0 %1158
        %v1161 = vsel %vm733, %v1157, 0
        %v1164 = vsel %vm733, %v1159, 0
        %1166 = vmatpush.bf16.xpose.msra.mxu0 0
        %1167 = vmatpush.bf16.xpose.msra.mxu0 0
        %1168 = vmatpush.bf16.xpose.msra.mxu0 0
        %1169 = vmatpush.bf16.xpose.msra.mxu0 0
        %1170 = vmatpush.bf16.xpose.msra.mxu0 0
        %1171 = vmatpush.bf16.xpose.msra.mxu0 0
        %1172 = vmatpush.bf16.xpose.msra.mxu0 0
        %1173 = vmatpush.bf16.xpose.msra.mxu0 %v1164
        %1174 = vmatmul.bf16.gmra.mxu0 %v1161
        %v1175 = vpop.f32.mrf.mxu0
        %v1176 = vadd.f32 0.0, %v1175
        %v1177 = vpop.f32.mrf.mxu0
        %1178 = vdwg.mxu0
        %v1179 = vmul.f32 %v1176, 0.25
        %v1180 = vadd.f32 %v1179, %v755
        %v1181 = vsel %vm758, %v1180, -inf
        %1182 = vmax.xlane.f32.xlu0 %v1181
        %v1183 = vpop.xlane.xlu0 %1182
        %v1184 = vsub.f32 %v1180, %v1183
        %v1185 = vmul.f32 %v1184, 1.442695
        %v1186 = vpow.pop %v1185
        %v1187 = vsel %vm758, %v1186, 0.0
        %1188 = vadd.xlane.f32.xlu0 %v1187
        %v1189 = vpop.xlane.xlu0 %1188
        %v1190 = vrcp.pop %v1189
        %v1191 = vmul.f32 %v1186, %v1190
        %v1192 = vpack.c.bf16 %v1191, %v1191
        %1193 = vrot.lane.b32.xlu0 %v1098, 48
        %v1194 = vpop.permute.xlu0 %1193
        %v1196 = vsel %vm758, %v1192, 0
        %v1199 = vsel %vm776, %v1194, 0
        %1201 = vmatpush.bf16.msra.mxu0 0
        %1202 = vmatpush.bf16.msra.mxu0 0
        %1203 = vmatpush.bf16.msra.mxu0 0
        %1204 = vmatpush.bf16.msra.mxu0 0
        %1205 = vmatpush.bf16.msra.mxu0 0
        %1206 = vmatpush.bf16.msra.mxu0 0
        %1207 = vmatpush.bf16.msra.mxu0 0
        %1208 = vmatpush.bf16.msra.mxu0 %v1199
        %1209 = vmatmul.bf16.gmra.mxu0 %v1196
        %v1210 = vpop.f32.mrf.mxu0
        %v1211 = vadd.f32 0.0, %v1210
        %v1212 = vpop.f32.mrf.mxu0
        %1213 = vdwg.mxu0
        %1215 = vrot.lane.b32.xlu0 %v1211, 16
        %v1216 = vpop.permute.xlu0 %1215
        %v1218 = vsel %vm733, %v1153, %v1216
        %s1219 = scalar_lea.vmem %s6, 16
        %v1220 = vld [vmem:[%s1219] sm:$0xf]
        %v1221 = vld [vmem:[%s1219 + $0x4] sm:$0xf]
        %v1222 = vld [vmem:[%s1219 + $0x8] sm:$0xf]
        %v1223 = vld [vmem:[%s1219 + $0xc] sm:$0xf]
        %v1224 = vpack.c.bf16 %v1218, %v1218
        %s1225 = scalar_lea.vmem %s7, 1
        %v1226 = vld [vmem:[%s1225] sm:$0x1]
        %v1228 = vperm.slane %v1226, 0
        %v1234 = vunpack.c.l.b16 %v1220
        %v1235 = vunpack.c.l.b16 %v1221
        %v1236 = vunpack.c.l.b16 %v1222
        %v1237 = vunpack.c.l.b16 %v1223
        %v1238 = vpack.c.b16 %v1235, %v1234
        %v1239 = vpack.c.b16 %v1237, %v1236
        %v1243 = vsel %vm654, %v1224, 0
        %1245 = vmatpush.bf16.msra.mxu0 0
        %1246 = vmatpush.bf16.msra.mxu0 0
        %1247 = vmatpush.bf16.msra.mxu0 0
        %1248 = vmatpush.bf16.msra.mxu0 0
        %1249 = vmatpush.bf16.msra.mxu0 0
        %1250 = vmatpush.bf16.msra.mxu0 0
        %1251 = vmatpush.bf16.msra.mxu0 %v1239
        %1252 = vmatpush.bf16.msra.mxu0 %v1238
        %1253 = vmatmul.bf16.gmra.mxu0 %v1243
        %v1254 = vpop.f32.mrf.mxu0
        %v1255 = vadd.f32 %v1228, %v1254
        %v1256 = vpop.f32.mrf.mxu0
        %1257 = vdwg.mxu0
        %v1258 = vadd.f32 %v1255, %v1058
        %s1259 = scalar_lea.vmem [#allocation5], 1
        %v1260 = vld [vmem:[%s1259] sm:$0x1]
        %s1261 = scalar_lea.vmem [#allocation7], 1
        %v1262 = vld [vmem:[%s1261] sm:$0x1]
        %v1263 = vsel %vm654, %v1258, 0.0
        %1264 = vadd.xlane.f32.xlu0 %v1263
        %v1265 = vpop.xlane.xlu0 %1264
        %v1266 = vmul.f32 %v1265, %v664
        %v1267 = vsub.f32 %v1258, %v1266
        %v1268 = vmul.f32 %v1267, %v1267
        %v1269 = vsel %vm654, %v1268, 0.0
        %1270 = vadd.xlane.f32.xlu0 %v1269
        %v1271 = vpop.xlane.xlu0 %1270
        %v1272 = vmul.f32 %v1271, %v664
        %v1273 = vadd.f32 %v1272, 1e-12
        %v1274 = vrsqrt.pop %v1273
        %v1275 = vmul.f32 %v1274, %v1273
        %v1276 = vmul.f32 %v1275, %v1274
        %v1277 = vmul.f32 0.5, %v1276
        %v1278 = vsub.f32 1.5, %v1277
        %v1279 = vmul.f32 %v1274, %v1278
        %vm1280 = vweird.f32 %v1273
        %vm1281 = vweird.f32 %v1274
        %vm1282 = vmor %vm1280, %vm1281
        %v1283 = vsel %vm1282, %v1274, %v1279
        %v1284 = vmul.f32 %v1267, %v1283
        %v1286 = vperm.slane %v1260, 0
        %v1288 = vmul.f32 %v1284, %v1286
        %v1290 = vperm.slane %v1262, 0
        %v1292 = vadd.f32 %v1288, %v1290
        %s1293 = scalar_lea.vmem %s10, 16
        %v1294 = vld [vmem:[%s1293] sm:$0xf]
        %v1295 = vld [vmem:[%s1293 + $0x4] sm:$0xf]
        %v1296 = vld [vmem:[%s1293 + $0x8] sm:$0xf]
        %v1297 = vld [vmem:[%s1293 + $0xc] sm:$0xf]
        %v1298 = vpack.c.bf16 %v1292, %v1292
        %s1299 = scalar_lea.vmem %s11, 1
        %v1300 = vld [vmem:[%s1299] sm:$0x1]
        %v1302 = vperm.slane %v1300, 0
        %v1308 = vunpack.c.l.b16 %v1294
        %v1309 = vunpack.c.l.b16 %v1295
        %v1310 = vunpack.c.l.b16 %v1296
        %v1311 = vunpack.c.l.b16 %v1297
        %v1312 = vpack.c.b16 %v1309, %v1308
        %v1313 = vpack.c.b16 %v1311, %v1310
        %v1317 = vsel %vm654, %v1298, 0
        %1319 = vmatpush.bf16.msra.mxu0 0
        %1320 = vmatpush.bf16.msra.mxu0 0
        %1321 = vmatpush.bf16.msra.mxu0 0
        %1322 = vmatpush.bf16.msra.mxu0 0
        %1323 = vmatpush.bf16.msra.mxu0 0
        %1324 = vmatpush.bf16.msra.mxu0 0
        %1325 = vmatpush.bf16.msra.mxu0 %v1313
        %1326 = vmatpush.bf16.msra.mxu0 %v1312
        %1327 = vmatmul.bf16.gmra.mxu0 %v1317
        %v1328 = vpop.f32.mrf.mxu0
        %v1329 = vadd.f32 %v1302, %v1328
        %v1330 = vpop.f32.mrf.mxu0
        %1331 = vdwg.mxu0
        %v1332 = vmul.f32 %v1329, 0.5
        %v1333 = vmul.f32 %v1329, 0.044715
        %v1334 = vmul.f32 %v1333, %v1329
        %v1335 = vmul.f32 %v1334, %v1329
        %v1336 = vadd.f32 %v1329, %v1335
        %v1337 = vmul.f32 %v1336, 0.7978846
        %v1338 = vtanh.pop %v1337
        %v1339 = vadd.f32 %v1338, 1.0
        %v1340 = vmul.f32 %v1332, %v1339
        %s1341 = scalar_lea.vmem %s12, 32
        %v1342 = vld [vmem:[%s1341] sm:$0xf]
        %v1343 = vld [vmem:[%s1341 + $0x4] sm:$0xf]
        %v1344 = vld [vmem:[%s1341 + $0x8] sm:$0xf]
        %v1345 = vld [vmem:[%s1341 + $0xc] sm:$0xf]
        %v1346 = vld [vmem:[%s1341 + $0x10] sm:$0xf]
        %v1347 = vld [vmem:[%s1341 + $0x14] sm:$0xf]
        %v1348 = vld [vmem:[%s1341 + $0x18] sm:$0xf]
        %v1349 = vld [vmem:[%s1341 + $0x1c] sm:$0xf]
        %v1350 = vpack.c.bf16 %v1340, %v1340
        %s1351 = scalar_lea.vmem %s13, 1
        %v1352 = vld [vmem:[%s1351] sm:$0x1]
        %v1354 = vperm.slane %v1352, 0
        %v1364 = vunpack.c.l.b16 %v1342
        %v1365 = vunpack.c.l.b16 %v1343
        %v1366 = vunpack.c.l.b16 %v1344
        %v1367 = vunpack.c.l.b16 %v1345
        %v1368 = vunpack.c.l.b16 %v1346
        %v1369 = vunpack.c.l.b16 %v1347
        %v1370 = vunpack.c.l.b16 %v1348
        %v1371 = vunpack.c.l.b16 %v1349
        %v1372 = vpack.c.b16 %v1365, %v1364
        %v1373 = vpack.c.b16 %v1367, %v1366
        %v1374 = vpack.c.b16 %v1369, %v1368
        %v1375 = vpack.c.b16 %v1371, %v1370
        %v1381 = vsel %vm1009, %v1350, 0
        %1383 = vmatpush.bf16.msra.mxu0 0
        %1384 = vmatpush.bf16.msra.mxu0 0
        %1385 = vmatpush.bf16.msra.mxu0 0
        %1386 = vmatpush.bf16.msra.mxu0 0
        %1387 = vmatpush.bf16.msra.mxu0 %v1375
        %1388 = vmatpush.bf16.msra.mxu0 %v1374
        %1389 = vmatpush.bf16.msra.mxu0 %v1373
        %1390 = vmatpush.bf16.msra.mxu0 %v1372
        %1391 = vmatmul.bf16.gmra.mxu0 %v1381
        %v1392 = vpop.f32.mrf.mxu0
        %v1393 = vadd.f32 %v1354, %v1392
        %v1394 = vpop.f32.mrf.mxu0
        %1395 = vdwg.mxu0
        %v1396 = vadd.f32 %v1393, %v1292
        %s1397 = scalar_lea.vmem %s14, 1
        %v1398 = vld [vmem:[%s1397] sm:$0x1]
        %s1399 = scalar_lea.vmem [#allocation8], 1
        %v1400 = vld [vmem:[%s1399] sm:$0x1]
        %v1401 = vsel %vm654, %v1396, 0.0
        %1402 = vadd.xlane.f32.xlu0 %v1401
        %v1403 = vpop.xlane.xlu0 %1402
        %v1404 = vmul.f32 %v1403, %v664
        %v1405 = vsub.f32 %v1396, %v1404
        %v1406 = vmul.f32 %v1405, %v1405
        %v1407 = vsel %vm654, %v1406, 0.0
        %1408 = vadd.xlane.f32.xlu0 %v1407
        %v1409 = vpop.xlane.xlu0 %1408
        %v1410 = vmul.f32 %v1409, %v664
        %v1411 = vadd.f32 %v1410, 1e-12
        %v1412 = vrsqrt.pop %v1411
        %v1413 = vmul.f32 %v1412, %v1411
        %v1414 = vmul.f32 %v1413, %v1412
        %v1415 = vmul.f32 0.5, %v1414
        %v1416 = vsub.f32 1.5, %v1415
        %v1417 = vmul.f32 %v1412, %v1416
        %vm1418 = vweird.f32 %v1411
        %vm1419 = vweird.f32 %v1412
        %vm1420 = vmor %vm1418, %vm1419
        %v1421 = vsel %vm1420, %v1412, %v1417
        %v1422 = vmul.f32 %v1405, %v1421
        %v1424 = vperm.slane %v1398, 0
        %v1426 = vmul.f32 %v1422, %v1424
        %v1428 = vperm.slane %v1400, 0
        %v1430 = vadd.f32 %v1426, %v1428
        %v1431 = vld [vmem:[%s16] sm:$0xf]
        %v1432 = vld [vmem:[%s16 + $0x4] sm:$0xf]
        %v1433 = vld [vmem:[%s16 + $0x8] sm:$0xf]
        %v1434 = vld [vmem:[%s16 + $0xc] sm:$0xf]
        %v1435 = vpack.c.bf16 %v1430, %v1430
        %v1436 = vld [vmem:[%s17] sm:$0x1]
        %v1441 = vunpack.c.l.b16 %v1431
        %v1442 = vunpack.c.l.b16 %v1432
        %v1443 = vunpack.c.l.b16 %v1433
        %v1444 = vunpack.c.l.b16 %v1434
        %v1445 = vpack.c.b16 %v1442, %v1441
        %v1446 = vpack.c.b16 %v1444, %v1443
        %v1450 = vsel %vm654, %v1435, 0
        %1452 = vmatpush.bf16.msra.mxu0 0
        %1453 = vmatpush.bf16.msra.mxu0 0
        %1454 = vmatpush.bf16.msra.mxu0 0
        %1455 = vmatpush.bf16.msra.mxu0 0
        %1456 = vmatpush.bf16.msra.mxu0 0
        %1457 = vmatpush.bf16.msra.mxu0 0
        %1458 = vmatpush.bf16.msra.mxu0 %v1446
        %1459 = vmatpush.bf16.msra.mxu0 %v1445
        %1460 = vmatmul.bf16.gmra.mxu0 %v1450
        %v1461 = vpop.f32.mrf.mxu0
        %v1462 = vadd.f32 %v1436, %v1461
        %v1463 = vpop.f32.mrf.mxu0
        %1464 = vdwg.mxu0
        %vm1465 = vcmask 32768
        %1466 = vst.msk [vmem:[%s641] sm:$0x1] %vm1465, %v1462
        %s1467 = sand.u32 %s431, 1
        %s1468 = scalar_lea.sflag [#allocation4], %s1467
        %s1469 = sand.u32 %s431, 1
        %s1470 = scalar_lea.vmem [#allocation10], %s1469
        // Predicated region
        $region109: #{tpu_custom_call.1} parent=91 // pred_check
          %p1471 = pneg %p441
        $region110: #{tpu_custom_call.1} parent=91 // pred_check_branch
          %1473 = sbr.rel (%p1471) target = $region112
        $region111: #{tpu_custom_call.1} parent=91 // pred_region
          %1475 = vsyncadd %s1468, 0
          %s1476 = scalar_lea.hbm %s18, %s35
          %s1478 = sshll.u32 %s1470, 4
          %s1479 = int_to_ptr.vmem [resolvable:$true] %s1478
          %s1480 = sshll.u32 %s1476, 4
          %s1481 = int_to_ptr.hbm [resolvable:$true] %s1480
          %1483 = dma.vmem_to_hbm [thread:$0]  %s1479, 16, %s1481, %s1468
        $region112: #{tpu_custom_call.1} parent=91 // pred_fallthru
          _
      $region92: #{tpu_custom_call.1} parent=5 // pred_fallthru
        _
      %p1484 = scmp.le.s32.totalorder 2, %s30
      // Predicated region
      $region113: #{tpu_custom_call.1} parent=5 // pred_check
        %p1485 = pneg %p1484
      $region114: #{tpu_custom_call.1} parent=5 // pred_check_branch
        %1487 = sbr.rel (%p1485) target = $region116
      $region115: #{tpu_custom_call.1} parent=5 // pred_region
        %s1488 = ssub.s32 %s30, 2
        // Predicated region
        $region117: #{tpu_custom_call.1} parent=115 // pred_check
          %p1489 = pneg %p447
        $region118: #{tpu_custom_call.1} parent=115 // pred_check_branch
          %1491 = sbr.rel (%p1489) target = $region120
        $region119: #{tpu_custom_call.1} parent=115 // pred_region
          %s1492 = sand.u32 %s432, 1
          %s1493 = scalar_lea.sflag [#allocation4], %s1492
          %s1494 = sand.u32 %s432, 1
          %s1495 = scalar_lea.vmem [#allocation10], %s1494
          %1497 = dma.done %s1493, 16
        $region120: #{tpu_custom_call.1} parent=115 // pred_fallthru
          _
      $region116: #{tpu_custom_call.1} parent=5 // pred_fallthru
        _
    $region6: #{tpu_custom_call.1} parent=1 // loop_footer
      %s34 = sadd.s32 1, %s30
    $region7: #{tpu_custom_call.1} parent=1 // loop_footer_branch
      %29 = sbr.rel target = $region3
    $region8: #{tpu_custom_call.1} parent=1 // loop_exit
      _
    %1498 = vsyncpa [#allocation3], 1
    %s1499 = scalar_lea.sflag [#allocation3], 1
    %1500 = vsyncpa %s1499, 1
    %1501 = vsyncpa [#allocation6], 1
    %1502 = vsyncpa [#allocation9], 1
    %1503 = vsyncpa [#allocation4], 1
    %s1504 = scalar_lea.sflag [#allocation4], 1
    %1505 = vsyncpa %s1504, 1

</llo_original>
